<compile_context>
chip_gen: v6e
topology: v6e:2x2x1
jax: 0.10.0
libtpu: 0.0.40
codegen_flags: <defaults>
</compile_context>

<pallas_src>
import jax
import jax.numpy as jnp
from jax.experimental import pallas as pl
from jax.experimental.pallas import tpu as pltpu


def mixer_block_channel_kernel(x_ref, se_w1_ref, se_w2t_ref, gamma_ref, beta_ref,
                               w1_ref, b1_ref, w2_ref, b2_ref, out_ref):
    xb = x_ref[...].astype(jnp.float32)           # (Bt, S, H) f32 work precision
    Bt, S, H = xb.shape

    se_w1 = se_w1_ref[...]                        # (S, Sr) == Linear(S,Sr).weight.T
    se_w2t = se_w2t_ref[...]                      # (S, Sr) == Linear(Sr,S).weight

    def se(y3):
        # Squeeze-and-excitation with S kept on the sublane axis throughout
        # (no lane<->sublane relayout): keepdims squeeze, then the two tiny FCs
        # as broadcast-multiply + sublane/lane reductions (VPU/XLU filler).
        p = jnp.mean(y3, axis=2, keepdims=True)                           # (Bt, S, 1)
        z = jnp.maximum(
            jnp.sum(p * se_w1[None, :, :], axis=1, keepdims=True), 0.0)   # (Bt, 1, Sr)
        g = jax.nn.sigmoid(
            jnp.sum(z * se_w2t[None, :, :], axis=2, keepdims=True))       # (Bt, S, 1)
        return y3 * g

    # residual 1: x1 = x + SE(x)   (f32 VPU)
    x1 = xb + se(xb)

    # Fold batch into the matmul M dimension (H stays the lane axis).
    x1f = x1.reshape(Bt * S, H)

    # LayerNorm over hidden dim (eps = 1e-5, PyTorch default) - f32 VPU math.
    mu = jnp.mean(x1f, axis=-1, keepdims=True)
    var = jnp.mean((x1f - mu) ** 2, axis=-1, keepdims=True)
    yn = (x1f - mu) * jax.lax.rsqrt(var + 1e-5)
    yn = yn * gamma_ref[...] + beta_ref[...]                              # (Bt*S, H)

    # MlpBlock channel mixing: Linear(H->C) + GELU + Linear(C->H).
    # bf16 MXU operands, f32 accumulation (regularization=0 -> no dropout/BN).
    # TODO(synk): tile over C here for very large channels_mlp_dim (keeps Bt large).
    h = jnp.dot(yn.astype(jnp.bfloat16), w1_ref[...],
                preferred_element_type=jnp.float32) + b1_ref[...]
    h = jax.nn.gelu(h, approximate=True)          # tanh form -> EUP slot
    y2 = jnp.dot(h.astype(jnp.bfloat16), w2_ref[...],
                 preferred_element_type=jnp.float32) + b2_ref[...]

    # residual 2: out = x1 + SE(y2)
    out_ref[...] = (x1 + se(y2.reshape(Bt, S, H))).astype(out_ref.dtype)


def _vmem_capacity_bytes():
    try:
        info = pltpu.get_tpu_info()
        for attr in ("vmem_capacity_bytes", "vmem_size_bytes", "vmem_bytes"):
            v = getattr(info, attr, None)
            if v:
                return int(v)
    except Exception:
        pass
    return 64 * 1024 * 1024     # conservative default: v7x per-TC VMEM


def _pick_batch_tile(B, S, H, C, Sr, act_itemsize, vmem_budget_bytes):
    """Largest Bt whose double-buffered x/out tiles + in-kernel intermediates fit
    the VMEM budget; kept to >=2 grid steps (when blocks remain >=256 rows) so
    the 'parallel' batch axis shards across v7x's two TensorCores."""
    weight_bytes = (2 * S * Sr * 4          # SE weights (f32)
                    + 2 * H * 4             # LN gamma/beta
                    + 2 * H * C * 2         # fc1/fc2 weights (bf16)
                    + C * 4 + H * 4)        # fc biases
    per_bt = (2 * 2 * S * H * act_itemsize  # dbl-buffered x + out tiles
              + 3 * S * H * 4               # x1 / yn / y2 f32 live values
              + S * C * 6)                  # f32 GELU intermediate + its bf16 MXU copy
    avail = max(per_bt, vmem_budget_bytes - weight_bytes)
    bt = int(max(1, min(B, avail // per_bt)))
    if bt >= B and B > 1 and (B // 2) * S >= 256:
        bt = int(pl.cdiv(B, 2))             # keep >=2 grid steps for dual-TC v7x
    return bt


def prepare_params(params):
    """One-time weight preparation (call at init, NOT per forward): bf16-cast the
    fc weights for the MXU and put both SE weights in (S, Sr) layout."""
    return {
        "se_w1": jnp.asarray(params["se_w1"], jnp.float32),       # (S, Sr)
        "se_w2t": jnp.asarray(params["se_w2"], jnp.float32).T,    # (S, Sr)
        "gamma": jnp.asarray(params["gamma"], jnp.float32),       # (1, H)
        "beta": jnp.asarray(params["beta"], jnp.float32),         # (1, H)
        "w1": jnp.asarray(params["w1"]).astype(jnp.bfloat16),     # (H, C)
        "b1": jnp.asarray(params["b1"], jnp.float32),             # (1, C)
        "w2": jnp.asarray(params["w2"]).astype(jnp.bfloat16),     # (C, H)
        "b2": jnp.asarray(params["b2"], jnp.float32),             # (1, H)
    }


def mixer_block_channel(x, prepped, *, batch_tile=None, single_buffer_weights=True):
    B, S, H = x.shape
    C = prepped["w1"].shape[1]
    Sr = prepped["se_w1"].shape[1]

    vmem_cap = _vmem_capacity_bytes()
    vmem_limit = int(min(0.75 * vmem_cap, 96 * 1024 * 1024))   # 48 MiB v7x / 96 MiB v5e-v6e
    if batch_tile is None:
        Bt = _pick_batch_tile(B, S, H, C, Sr, jnp.dtype(x.dtype).itemsize,
                              int(0.7 * vmem_limit))
    else:
        Bt = batch_tile
    grid_b = int(pl.cdiv(B, Bt))
    Bp = grid_b * Bt

    # Ragged batch: pad with zero rows (LN/SE/matmuls are per-row / per-batch-
    # element, so padded rows never contaminate real outputs); sliced off below.
    x_in = x if Bp == B else jnp.pad(x, ((0, Bp - B), (0, 0), (0, 0)))

    def const_spec(shape):
        # Grid-invariant block (constant index map): fetched once; single-buffer
        # it to halve its VMEM footprint (frees room for a larger Bt on v7x).
        idx = lambda b: (0,) * len(shape)
        if single_buffer_weights:
            try:
                return pl.BlockSpec(shape, idx, pipeline_mode=pl.Buffered(1))
            except TypeError:
                pass
        return pl.BlockSpec(shape, idx)

    call = pl.pallas_call(
        mixer_block_channel_kernel,
        out_shape=jax.ShapeDtypeStruct((Bp, S, H), x.dtype),
        grid_spec=pltpu.PrefetchScalarGridSpec(
            num_scalar_prefetch=0,
            grid=(grid_b,),
            in_specs=[
                pl.BlockSpec((Bt, S, H), lambda b: (b, 0, 0)),   # x batch tile
                const_spec((S, Sr)),                             # SE fc1 weight (in,out)
                const_spec((S, Sr)),                             # SE fc2 weight, transposed
                const_spec((1, H)),                              # LN gamma
                const_spec((1, H)),                              # LN beta
                const_spec((H, C)),                              # fc1 W (bf16)
                const_spec((1, C)),                              # fc1 b (f32)
                const_spec((C, H)),                              # fc2 W (bf16)
                const_spec((1, H)),                              # fc2 b (f32)
            ],
            out_specs=pl.BlockSpec((Bt, S, H), lambda b: (b, 0, 0)),
        ),
        compiler_params=pltpu.CompilerParams(
            dimension_semantics=("parallel",),
            vmem_limit_bytes=vmem_limit),
    )
    out = call(x_in, prepped["se_w1"], prepped["se_w2t"], prepped["gamma"],
               prepped["beta"], prepped["w1"], prepped["b1"],
               prepped["w2"], prepped["b2"])
    return out if Bp == B else out[:B]


def reference_exact(x, p):
    """Pure-JAX reference with exact PyTorch semantics (f32, erf GELU)."""
    def se(y):
        g = jnp.mean(y, axis=-1)
        g = jnp.maximum(g @ p["se_w1"], 0.0)
        g = jax.nn.sigmoid(g @ p["se_w2"])
        return y * g[..., None]
    x1 = x + se(x)
    mu = jnp.mean(x1, -1, keepdims=True)
    var = jnp.mean((x1 - mu) ** 2, -1, keepdims=True)
    yn = (x1 - mu) / jnp.sqrt(var + 1e-5) * p["gamma"][0] + p["beta"][0]
    h = jax.nn.gelu(yn @ p["w1"] + p["b1"][0], approximate=False)
    y2 = h @ p["w2"] + p["b2"][0]
    return x1 + se(y2)


def reference_matched(x, p):
    """Pure-JAX reference with the SAME precision choices as the kernel
    (bf16 MXU operands, f32 accumulation, tanh-approx GELU)."""
    def se(y):
        g = jnp.mean(y, axis=-1)
        g = jnp.maximum(g @ p["se_w1"], 0.0)
        g = jax.nn.sigmoid(g @ p["se_w2"])
        return y * g[..., None]
    x1 = x + se(x)
    mu = jnp.mean(x1, -1, keepdims=True)
    var = jnp.mean((x1 - mu) ** 2, -1, keepdims=True)
    yn = (x1 - mu) * jax.lax.rsqrt(var + 1e-5)
    yn = yn * p["gamma"][0] + p["beta"][0]
    w1 = p["w1"].astype(jnp.bfloat16)
    w2 = p["w2"].astype(jnp.bfloat16)
    h = jnp.dot(yn.astype(jnp.bfloat16), w1,
                preferred_element_type=jnp.float32) + p["b1"][0]
    h = jax.nn.gelu(h, approximate=True)
    y2 = jnp.dot(h.astype(jnp.bfloat16), w2,
                 preferred_element_type=jnp.float32) + p["b2"][0]
    return x1 + se(y2)


if __name__ == "__main__":
    # MixerBlock_Channel(channels_mlp_dim=C, seq_len=S, hidden_dim=H,
    #                    activation='gelu', regularization=0, r_se=4, use_se=True)
    B, S, H, C, r_se = 2, 8, 128, 128, 4

    key = jax.random.PRNGKey(0)
    ks = jax.random.split(key, 9)
    sc = 0.1
    params = {
        # SELayer(seq_len=S, r=4): Linear(S, S//r, bias=False), Linear(S//r, S, bias=False)
        "se_w1": (sc * jax.random.normal(ks[0], (S, S // r_se))).astype(jnp.float32),
        "se_w2": (sc * jax.random.normal(ks[1], (S // r_se, S))).astype(jnp.float32),
        # LayerNorm(H)
        "gamma": (1.0 + sc * jax.random.normal(ks[2], (1, H))).astype(jnp.float32),
        "beta": (sc * jax.random.normal(ks[3], (1, H))).astype(jnp.float32),
        # MlpBlock: fc1 Linear(H, C), fc2 Linear(C, H)  (stored as (in, out))
        "w1": (sc * jax.random.normal(ks[4], (H, C))).astype(jnp.float32),
        "b1": (sc * jax.random.normal(ks[5], (1, C))).astype(jnp.float32),
        "w2": (sc * jax.random.normal(ks[6], (C, H))).astype(jnp.float32),
        "b2": (sc * jax.random.normal(ks[7], (1, H))).astype(jnp.float32),
    }
    x = jax.random.normal(ks[8], (B, S, H), dtype=jnp.float32)

    # One-time weight prep, hoisted out of the forward path.
    prepped = prepare_params(params)
    jax.block_until_ready(jax.tree_util.tree_leaves(prepped))

    def run(sbw):
        o = mixer_block_channel(x, prepped, single_buffer_weights=sbw)
        jax.block_until_ready(o)
        return o

    try:
        out = run(True)
    except Exception:
        # Fallback if this JAX build rejects single-buffered (Buffered(1)) specs.
        out = run(False)

    # 1) Kernel mechanics vs. a matched-precision reference (same bf16 casts,
    #    same tanh GELU): differences are only reduction-order level.
    ref_m = reference_matched(x, params)
    err_m = float(jnp.max(jnp.abs(out - ref_m)))
    assert jnp.allclose(out, ref_m, atol=5e-3, rtol=5e-3), f"matched max abs err {err_m}"

    # 2) End-to-end vs. exact f32/erf module semantics: bf16 MXU operands and
    #    tanh GELU introduce ~1e-2-level deviation; bound it loosely.
    ref_e = reference_exact(x, params)
    err_e = float(jnp.max(jnp.abs(out - ref_e)))
    assert jnp.allclose(out, ref_e, atol=1e-1, rtol=1e-1), f"exact max abs err {err_e}"

    print("KERNEL_OK")
</pallas_src>

<mosaic_0001>
module attributes {stable_mosaic.version = 11 : i64} {
  func.func @mixer_block_channel_kernel(%arg0: i32, %arg1: memref<2x8x128xf32, #tpu.memory_space<vmem>>, %arg2: memref<8x2xf32, #tpu.memory_space<vmem>>, %arg3: memref<8x2xf32, #tpu.memory_space<vmem>>, %arg4: memref<1x128xf32, #tpu.memory_space<vmem>>, %arg5: memref<1x128xf32, #tpu.memory_space<vmem>>, %arg6: memref<128x128xbf16, #tpu.memory_space<vmem>>, %arg7: memref<1x128xf32, #tpu.memory_space<vmem>>, %arg8: memref<128x128xbf16, #tpu.memory_space<vmem>>, %arg9: memref<1x128xf32, #tpu.memory_space<vmem>>, %arg10: memref<2x8x128xf32, #tpu.memory_space<vmem>>) attributes {dimension_semantics = [#tpu.dimension_semantics<parallel>], iteration_bounds = array<i64: 1>, scalar_prefetch = 0 : i64, scratch_operands = 0 : i64, tpu.core_type = #tpu.core_type<tc>, window_params = [{transform_indices = @transform_0, window_bounds = array<i64: 2, 8, 128>}, {pipeline_mode = #tpu.pipeline_mode<synchronous>, transform_indices = @transform_1, window_bounds = array<i64: 8, 2>}, {pipeline_mode = #tpu.pipeline_mode<synchronous>, transform_indices = @transform_2, window_bounds = array<i64: 8, 2>}, {pipeline_mode = #tpu.pipeline_mode<synchronous>, transform_indices = @transform_3, window_bounds = array<i64: 1, 128>}, {pipeline_mode = #tpu.pipeline_mode<synchronous>, transform_indices = @transform_4, window_bounds = array<i64: 1, 128>}, {pipeline_mode = #tpu.pipeline_mode<synchronous>, transform_indices = @transform_5, window_bounds = array<i64: 128, 128>}, {pipeline_mode = #tpu.pipeline_mode<synchronous>, transform_indices = @transform_6, window_bounds = array<i64: 1, 128>}, {pipeline_mode = #tpu.pipeline_mode<synchronous>, transform_indices = @transform_7, window_bounds = array<i64: 128, 128>}, {pipeline_mode = #tpu.pipeline_mode<synchronous>, transform_indices = @transform_8, window_bounds = array<i64: 1, 128>}, {transform_indices = @transform_9, window_bounds = array<i64: 2, 8, 128>}]} {
    %c0 = arith.constant 0 : index
    %c0_0 = arith.constant 0 : index
    %c0_1 = arith.constant 0 : index
    %0 = vector.load %arg1[%c0, %c0_0, %c0_1] : memref<2x8x128xf32, #tpu.memory_space<vmem>>, vector<2x8x128xf32>
    %c0_2 = arith.constant 0 : index
    %c0_3 = arith.constant 0 : index
    %1 = vector.load %arg2[%c0_2, %c0_3] : memref<8x2xf32, #tpu.memory_space<vmem>>, vector<8x2xf32>
    %c0_4 = arith.constant 0 : index
    %c0_5 = arith.constant 0 : index
    %2 = vector.load %arg3[%c0_4, %c0_5] : memref<8x2xf32, #tpu.memory_space<vmem>>, vector<8x2xf32>
    %cst = arith.constant dense<0.000000e+00> : vector<2x8xf32>
    %3 = vector.multi_reduction <add>, %0, %cst [2] : vector<2x8x128xf32> to vector<2x8xf32>
    %4 = vector.shape_cast %3 : vector<2x8xf32> to vector<2x8x1xf32>
    %cst_6 = arith.constant 1.280000e+02 : f32
    %5 = vector.broadcast %cst_6 : f32 to vector<2x8x1xf32>
    %6 = arith.divf %4, %5 : vector<2x8x1xf32>
    %7 = vector.shape_cast %1 : vector<8x2xf32> to vector<1x8x2xf32>
    %8 = vector.broadcast %6 : vector<2x8x1xf32> to vector<2x8x2xf32>
    %9 = vector.broadcast %7 : vector<1x8x2xf32> to vector<2x8x2xf32>
    %10 = arith.mulf %8, %9 : vector<2x8x2xf32>
    %cst_7 = arith.constant dense<0.000000e+00> : vector<2x2xf32>
    %11 = vector.multi_reduction <add>, %10, %cst_7 [1] : vector<2x8x2xf32> to vector<2x2xf32>
    %12 = vector.shape_cast %11 : vector<2x2xf32> to vector<2x1x2xf32>
    %cst_8 = arith.constant 0.000000e+00 : f32
    %13 = vector.broadcast %cst_8 : f32 to vector<2x1x2xf32>
    %14 = arith.maximumf %12, %13 : vector<2x1x2xf32>
    %15 = vector.shape_cast %2 : vector<8x2xf32> to vector<1x8x2xf32>
    %16 = vector.broadcast %14 : vector<2x1x2xf32> to vector<2x8x2xf32>
    %17 = vector.broadcast %15 : vector<1x8x2xf32> to vector<2x8x2xf32>
    %18 = arith.mulf %16, %17 : vector<2x8x2xf32>
    %cst_9 = arith.constant dense<0.000000e+00> : vector<2x8xf32>
    %19 = vector.multi_reduction <add>, %18, %cst_9 [2] : vector<2x8x2xf32> to vector<2x8xf32>
    %20 = vector.shape_cast %19 : vector<2x8xf32> to vector<2x8x1xf32>
    %21 = arith.negf %20 : vector<2x8x1xf32>
    %22 = math.exp %21 : vector<2x8x1xf32>
    %cst_10 = arith.constant 1.000000e+00 : f32
    %23 = vector.broadcast %cst_10 : f32 to vector<2x8x1xf32>
    %24 = arith.addf %23, %22 : vector<2x8x1xf32>
    %25 = arith.divf %23, %24 : vector<2x8x1xf32>
    %26 = vector.broadcast %25 : vector<2x8x1xf32> to vector<2x8x128xf32>
    %27 = arith.mulf %0, %26 : vector<2x8x128xf32>
    %28 = arith.addf %0, %27 : vector<2x8x128xf32>
    %29 = vector.shape_cast %28 : vector<2x8x128xf32> to vector<16x128xf32>
    %cst_11 = arith.constant dense<0.000000e+00> : vector<16xf32>
    %30 = vector.multi_reduction <add>, %29, %cst_11 [1] : vector<16x128xf32> to vector<16xf32>
    %31 = vector.shape_cast %30 : vector<16xf32> to vector<16x1xf32>
    %cst_12 = arith.constant 1.280000e+02 : f32
    %32 = vector.broadcast %cst_12 : f32 to vector<16x1xf32>
    %33 = arith.divf %31, %32 : vector<16x1xf32>
    %34 = vector.broadcast %33 : vector<16x1xf32> to vector<16x128xf32>
    %35 = arith.subf %29, %34 : vector<16x128xf32>
    %36 = arith.mulf %35, %35 : vector<16x128xf32>
    %cst_13 = arith.constant dense<0.000000e+00> : vector<16xf32>
    %37 = vector.multi_reduction <add>, %36, %cst_13 [1] : vector<16x128xf32> to vector<16xf32>
    %38 = vector.shape_cast %37 : vector<16xf32> to vector<16x1xf32>
    %cst_14 = arith.constant 1.280000e+02 : f32
    %39 = vector.broadcast %cst_14 : f32 to vector<16x1xf32>
    %40 = arith.divf %38, %39 : vector<16x1xf32>
    %41 = vector.broadcast %33 : vector<16x1xf32> to vector<16x128xf32>
    %42 = arith.subf %29, %41 : vector<16x128xf32>
    %cst_15 = arith.constant 9.99999974E-6 : f32
    %43 = vector.broadcast %cst_15 : f32 to vector<16x1xf32>
    %44 = arith.addf %40, %43 : vector<16x1xf32>
    %45 = math.rsqrt %44 : vector<16x1xf32>
    %46 = vector.broadcast %45 : vector<16x1xf32> to vector<16x128xf32>
    %47 = arith.mulf %42, %46 : vector<16x128xf32>
    %c0_16 = arith.constant 0 : index
    %c0_17 = arith.constant 0 : index
    %48 = vector.load %arg4[%c0_16, %c0_17] : memref<1x128xf32, #tpu.memory_space<vmem>>, vector<1x128xf32>
    %49 = vector.broadcast %48 : vector<1x128xf32> to vector<16x128xf32>
    %50 = arith.mulf %47, %49 : vector<16x128xf32>
    %c0_18 = arith.constant 0 : index
    %c0_19 = arith.constant 0 : index
    %51 = vector.load %arg5[%c0_18, %c0_19] : memref<1x128xf32, #tpu.memory_space<vmem>>, vector<1x128xf32>
    %52 = vector.broadcast %51 : vector<1x128xf32> to vector<16x128xf32>
    %53 = arith.addf %50, %52 : vector<16x128xf32>
    %54 = arith.truncf %53 : vector<16x128xf32> to vector<16x128xbf16>
    %c0_20 = arith.constant 0 : index
    %c0_21 = arith.constant 0 : index
    %55 = vector.load %arg6[%c0_20, %c0_21] : memref<128x128xbf16, #tpu.memory_space<vmem>>, vector<128x128xbf16>
    %cst_22 = arith.constant dense<0.000000e+00> : vector<16x128xf32>
    %56 = tpu.matmul %54, %55, %cst_22 {dimension_numbers = #tpu.dot_dimension_numbers<[1], [0], [0], [1], [0, 0, 1, 1], [], []>} : vector<16x128xbf16>, vector<128x128xbf16>, vector<16x128xf32> -> vector<16x128xf32>
    %c0_23 = arith.constant 0 : index
    %c0_24 = arith.constant 0 : index
    %57 = vector.load %arg7[%c0_23, %c0_24] : memref<1x128xf32, #tpu.memory_space<vmem>>, vector<1x128xf32>
    %58 = vector.broadcast %57 : vector<1x128xf32> to vector<16x128xf32>
    %59 = arith.addf %56, %58 : vector<16x128xf32>
    %60 = arith.mulf %59, %59 : vector<16x128xf32>
    %61 = arith.mulf %59, %60 : vector<16x128xf32>
    %cst_25 = arith.constant 4.471500e-02 : f32
    %62 = vector.broadcast %cst_25 : f32 to vector<16x128xf32>
    %63 = arith.mulf %62, %61 : vector<16x128xf32>
    %64 = arith.addf %59, %63 : vector<16x128xf32>
    %cst_26 = arith.constant 0.797884583 : f32
    %65 = vector.broadcast %cst_26 : f32 to vector<16x128xf32>
    %66 = arith.mulf %65, %64 : vector<16x128xf32>
    %67 = math.tanh %66 : vector<16x128xf32>
    %cst_27 = arith.constant 1.000000e+00 : f32
    %68 = vector.broadcast %cst_27 : f32 to vector<16x128xf32>
    %69 = arith.addf %68, %67 : vector<16x128xf32>
    %cst_28 = arith.constant 5.000000e-01 : f32
    %70 = vector.broadcast %cst_28 : f32 to vector<16x128xf32>
    %71 = arith.mulf %70, %69 : vector<16x128xf32>
    %72 = arith.mulf %59, %71 : vector<16x128xf32>
    %73 = arith.truncf %72 : vector<16x128xf32> to vector<16x128xbf16>
    %c0_29 = arith.constant 0 : index
    %c0_30 = arith.constant 0 : index
    %74 = vector.load %arg8[%c0_29, %c0_30] : memref<128x128xbf16, #tpu.memory_space<vmem>>, vector<128x128xbf16>
    %cst_31 = arith.constant dense<0.000000e+00> : vector<16x128xf32>
    %75 = tpu.matmul %73, %74, %cst_31 {dimension_numbers = #tpu.dot_dimension_numbers<[1], [0], [0], [1], [0, 0, 1, 1], [], []>} : vector<16x128xbf16>, vector<128x128xbf16>, vector<16x128xf32> -> vector<16x128xf32>
    %c0_32 = arith.constant 0 : index
    %c0_33 = arith.constant 0 : index
    %76 = vector.load %arg9[%c0_32, %c0_33] : memref<1x128xf32, #tpu.memory_space<vmem>>, vector<1x128xf32>
    %77 = vector.broadcast %76 : vector<1x128xf32> to vector<16x128xf32>
    %78 = arith.addf %75, %77 : vector<16x128xf32>
    %79 = vector.shape_cast %78 : vector<16x128xf32> to vector<2x8x128xf32>
    %cst_34 = arith.constant dense<0.000000e+00> : vector<2x8xf32>
    %80 = vector.multi_reduction <add>, %79, %cst_34 [2] : vector<2x8x128xf32> to vector<2x8xf32>
    %81 = vector.shape_cast %80 : vector<2x8xf32> to vector<2x8x1xf32>
    %cst_35 = arith.constant 1.280000e+02 : f32
    %82 = vector.broadcast %cst_35 : f32 to vector<2x8x1xf32>
    %83 = arith.divf %81, %82 : vector<2x8x1xf32>
    %84 = vector.shape_cast %1 : vector<8x2xf32> to vector<1x8x2xf32>
    %85 = vector.broadcast %83 : vector<2x8x1xf32> to vector<2x8x2xf32>
    %86 = vector.broadcast %84 : vector<1x8x2xf32> to vector<2x8x2xf32>
    %87 = arith.mulf %85, %86 : vector<2x8x2xf32>
    %cst_36 = arith.constant dense<0.000000e+00> : vector<2x2xf32>
    %88 = vector.multi_reduction <add>, %87, %cst_36 [1] : vector<2x8x2xf32> to vector<2x2xf32>
    %89 = vector.shape_cast %88 : vector<2x2xf32> to vector<2x1x2xf32>
    %cst_37 = arith.constant 0.000000e+00 : f32
    %90 = vector.broadcast %cst_37 : f32 to vector<2x1x2xf32>
    %91 = arith.maximumf %89, %90 : vector<2x1x2xf32>
    %92 = vector.shape_cast %2 : vector<8x2xf32> to vector<1x8x2xf32>
    %93 = vector.broadcast %91 : vector<2x1x2xf32> to vector<2x8x2xf32>
    %94 = vector.broadcast %92 : vector<1x8x2xf32> to vector<2x8x2xf32>
    %95 = arith.mulf %93, %94 : vector<2x8x2xf32>
    %cst_38 = arith.constant dense<0.000000e+00> : vector<2x8xf32>
    %96 = vector.multi_reduction <add>, %95, %cst_38 [2] : vector<2x8x2xf32> to vector<2x8xf32>
    %97 = vector.shape_cast %96 : vector<2x8xf32> to vector<2x8x1xf32>
    %98 = arith.negf %97 : vector<2x8x1xf32>
    %99 = math.exp %98 : vector<2x8x1xf32>
    %cst_39 = arith.constant 1.000000e+00 : f32
    %100 = vector.broadcast %cst_39 : f32 to vector<2x8x1xf32>
    %101 = arith.addf %100, %99 : vector<2x8x1xf32>
    %102 = arith.divf %100, %101 : vector<2x8x1xf32>
    %103 = vector.broadcast %102 : vector<2x8x1xf32> to vector<2x8x128xf32>
    %104 = arith.mulf %79, %103 : vector<2x8x128xf32>
    %105 = arith.addf %28, %104 : vector<2x8x128xf32>
    %c0_40 = arith.constant 0 : index
    %c0_41 = arith.constant 0 : index
    %c0_42 = arith.constant 0 : index
    %106 = vector.load %arg10[%c0_40, %c0_41, %c0_42] : memref<2x8x128xf32, #tpu.memory_space<vmem>>, vector<2x8x128xf32>
    tpu.vector_store %arg10[%c0_40, %c0_41, %c0_42], %105 {strides = array<i32>} : memref<2x8x128xf32, #tpu.memory_space<vmem>>, vector<2x8x128xf32>,
    return
  }
  func.func @transform_0(%arg0: i32) -> (i32, i32, i32) {
    %c0_i32 = arith.constant 0 : i32
    %c0_i32_0 = arith.constant 0 : i32
    %c0_i32_1 = arith.constant 0 : i32
    return %arg0, %c0_i32, %c0_i32_0 : i32, i32, i32
  }
  func.func @transform_1(%arg0: i32) -> (i32, i32) {
    %c0_i32 = arith.constant 0 : i32
    %c0_i32_0 = arith.constant 0 : i32
    %c0_i32_1 = arith.constant 0 : i32
    return %c0_i32, %c0_i32_0 : i32, i32
  }
  func.func @transform_2(%arg0: i32) -> (i32, i32) {
    %c0_i32 = arith.constant 0 : i32
    %c0_i32_0 = arith.constant 0 : i32
    %c0_i32_1 = arith.constant 0 : i32
    return %c0_i32, %c0_i32_0 : i32, i32
  }
  func.func @transform_3(%arg0: i32) -> (i32, i32) {
    %c0_i32 = arith.constant 0 : i32
    %c0_i32_0 = arith.constant 0 : i32
    %c0_i32_1 = arith.constant 0 : i32
    return %c0_i32, %c0_i32_0 : i32, i32
  }
  func.func @transform_4(%arg0: i32) -> (i32, i32) {
    %c0_i32 = arith.constant 0 : i32
    %c0_i32_0 = arith.constant 0 : i32
    %c0_i32_1 = arith.constant 0 : i32
    return %c0_i32, %c0_i32_0 : i32, i32
  }
  func.func @transform_5(%arg0: i32) -> (i32, i32) {
    %c0_i32 = arith.constant 0 : i32
    %c0_i32_0 = arith.constant 0 : i32
    %c0_i32_1 = arith.constant 0 : i32
    return %c0_i32, %c0_i32_0 : i32, i32
  }
  func.func @transform_6(%arg0: i32) -> (i32, i32) {
    %c0_i32 = arith.constant 0 : i32
    %c0_i32_0 = arith.constant 0 : i32
    %c0_i32_1 = arith.constant 0 : i32
    return %c0_i32, %c0_i32_0 : i32, i32
  }
  func.func @transform_7(%arg0: i32) -> (i32, i32) {
    %c0_i32 = arith.constant 0 : i32
    %c0_i32_0 = arith.constant 0 : i32
    %c0_i32_1 = arith.constant 0 : i32
    return %c0_i32, %c0_i32_0 : i32, i32
  }
  func.func @transform_8(%arg0: i32) -> (i32, i32) {
    %c0_i32 = arith.constant 0 : i32
    %c0_i32_0 = arith.constant 0 : i32
    %c0_i32_1 = arith.constant 0 : i32
    return %c0_i32, %c0_i32_0 : i32, i32
  }
  func.func @transform_9(%arg0: i32) -> (i32, i32, i32) {
    %c0_i32 = arith.constant 0 : i32
    %c0_i32_0 = arith.constant 0 : i32
    %c0_i32_1 = arith.constant 0 : i32
    return %arg0, %c0_i32, %c0_i32_0 : i32, i32, i32
  }
}

module attributes {stable_mosaic.version = 11 : i64} {
  func.func @mixer_block_channel_kernel(%arg0: i32, %arg1: memref<2x8x128xf32, #tpu.memory_space<vmem>>, %arg2: memref<8x2xf32, #tpu.memory_space<vmem>>, %arg3: memref<8x2xf32, #tpu.memory_space<vmem>>, %arg4: memref<1x128xf32, #tpu.memory_space<vmem>>, %arg5: memref<1x128xf32, #tpu.memory_space<vmem>>, %arg6: memref<128x128xbf16, #tpu.memory_space<vmem>>, %arg7: memref<1x128xf32, #tpu.memory_space<vmem>>, %arg8: memref<128x128xbf16, #tpu.memory_space<vmem>>, %arg9: memref<1x128xf32, #tpu.memory_space<vmem>>, %arg10: memref<2x8x128xf32, #tpu.memory_space<vmem>>) attributes {dimension_semantics = [#tpu.dimension_semantics<parallel>], iteration_bounds = array<i64: 1>, scalar_prefetch = 0 : i64, scratch_operands = 0 : i64, tpu.core_type = #tpu.core_type<tc>, window_params = [{transform_indices = @transform_0, window_bounds = array<i64: 2, 8, 128>}, {pipeline_mode = #tpu.pipeline_mode<synchronous>, transform_indices = @transform_1, window_bounds = array<i64: 8, 2>}, {pipeline_mode = #tpu.pipeline_mode<synchronous>, transform_indices = @transform_2, window_bounds = array<i64: 8, 2>}, {pipeline_mode = #tpu.pipeline_mode<synchronous>, transform_indices = @transform_3, window_bounds = array<i64: 1, 128>}, {pipeline_mode = #tpu.pipeline_mode<synchronous>, transform_indices = @transform_4, window_bounds = array<i64: 1, 128>}, {pipeline_mode = #tpu.pipeline_mode<synchronous>, transform_indices = @transform_5, window_bounds = array<i64: 128, 128>}, {pipeline_mode = #tpu.pipeline_mode<synchronous>, transform_indices = @transform_6, window_bounds = array<i64: 1, 128>}, {pipeline_mode = #tpu.pipeline_mode<synchronous>, transform_indices = @transform_7, window_bounds = array<i64: 128, 128>}, {pipeline_mode = #tpu.pipeline_mode<synchronous>, transform_indices = @transform_8, window_bounds = array<i64: 1, 128>}, {transform_indices = @transform_9, window_bounds = array<i64: 2, 8, 128>}]} {
    %c0 = arith.constant 0 : index
    %c0_0 = arith.constant 0 : index
    %c0_1 = arith.constant 0 : index
    %0 = vector.load %arg1[%c0, %c0_0, %c0_1] : memref<2x8x128xf32, #tpu.memory_space<vmem>>, vector<2x8x128xf32>
    %c0_2 = arith.constant 0 : index
    %c0_3 = arith.constant 0 : index
    %1 = vector.load %arg2[%c0_2, %c0_3] : memref<8x2xf32, #tpu.memory_space<vmem>>, vector<8x2xf32>
    %c0_4 = arith.constant 0 : index
    %c0_5 = arith.constant 0 : index
    %2 = vector.load %arg3[%c0_4, %c0_5] : memref<8x2xf32, #tpu.memory_space<vmem>>, vector<8x2xf32>
    %cst = arith.constant dense<0.000000e+00> : vector<2x8xf32>
    %3 = vector.multi_reduction <add>, %0, %cst [2] : vector<2x8x128xf32> to vector<2x8xf32>
    %4 = vector.shape_cast %3 : vector<2x8xf32> to vector<2x8x1xf32>
    %cst_6 = arith.constant 1.280000e+02 : f32
    %5 = vector.broadcast %cst_6 : f32 to vector<2x8x1xf32>
    %6 = arith.divf %4, %5 : vector<2x8x1xf32>
    %7 = vector.shape_cast %1 : vector<8x2xf32> to vector<1x8x2xf32>
    %8 = vector.broadcast %6 : vector<2x8x1xf32> to vector<2x8x2xf32>
    %9 = vector.broadcast %7 : vector<1x8x2xf32> to vector<2x8x2xf32>
    %10 = arith.mulf %8, %9 : vector<2x8x2xf32>
    %cst_7 = arith.constant dense<0.000000e+00> : vector<2x2xf32>
    %11 = vector.multi_reduction <add>, %10, %cst_7 [1] : vector<2x8x2xf32> to vector<2x2xf32>
    %12 = vector.shape_cast %11 : vector<2x2xf32> to vector<2x1x2xf32>
    %cst_8 = arith.constant 0.000000e+00 : f32
    %13 = vector.broadcast %cst_8 : f32 to vector<2x1x2xf32>
    %14 = arith.maximumf %12, %13 : vector<2x1x2xf32>
    %15 = vector.shape_cast %2 : vector<8x2xf32> to vector<1x8x2xf32>
    %16 = vector.broadcast %14 : vector<2x1x2xf32> to vector<2x8x2xf32>
    %17 = vector.broadcast %15 : vector<1x8x2xf32> to vector<2x8x2xf32>
    %18 = arith.mulf %16, %17 : vector<2x8x2xf32>
    %cst_9 = arith.constant dense<0.000000e+00> : vector<2x8xf32>
    %19 = vector.multi_reduction <add>, %18, %cst_9 [2] : vector<2x8x2xf32> to vector<2x8xf32>
    %20 = vector.shape_cast %19 : vector<2x8xf32> to vector<2x8x1xf32>
    %21 = arith.negf %20 : vector<2x8x1xf32>
    %22 = math.exp %21 : vector<2x8x1xf32>
    %cst_10 = arith.constant 1.000000e+00 : f32
    %23 = vector.broadcast %cst_10 : f32 to vector<2x8x1xf32>
    %24 = arith.addf %23, %22 : vector<2x8x1xf32>
    %25 = arith.divf %23, %24 : vector<2x8x1xf32>
    %26 = vector.broadcast %25 : vector<2x8x1xf32> to vector<2x8x128xf32>
    %27 = arith.mulf %0, %26 : vector<2x8x128xf32>
    %28 = arith.addf %0, %27 : vector<2x8x128xf32>
    %29 = vector.shape_cast %28 : vector<2x8x128xf32> to vector<16x128xf32>
    %cst_11 = arith.constant dense<0.000000e+00> : vector<16xf32>
    %30 = vector.multi_reduction <add>, %29, %cst_11 [1] : vector<16x128xf32> to vector<16xf32>
    %31 = vector.shape_cast %30 : vector<16xf32> to vector<16x1xf32>
    %cst_12 = arith.constant 1.280000e+02 : f32
    %32 = vector.broadcast %cst_12 : f32 to vector<16x1xf32>
    %33 = arith.divf %31, %32 : vector<16x1xf32>
    %34 = vector.broadcast %33 : vector<16x1xf32> to vector<16x128xf32>
    %35 = arith.subf %29, %34 : vector<16x128xf32>
    %36 = arith.mulf %35, %35 : vector<16x128xf32>
    %cst_13 = arith.constant dense<0.000000e+00> : vector<16xf32>
    %37 = vector.multi_reduction <add>, %36, %cst_13 [1] : vector<16x128xf32> to vector<16xf32>
    %38 = vector.shape_cast %37 : vector<16xf32> to vector<16x1xf32>
    %cst_14 = arith.constant 1.280000e+02 : f32
    %39 = vector.broadcast %cst_14 : f32 to vector<16x1xf32>
    %40 = arith.divf %38, %39 : vector<16x1xf32>
    %41 = vector.broadcast %33 : vector<16x1xf32> to vector<16x128xf32>
    %42 = arith.subf %29, %41 : vector<16x128xf32>
    %cst_15 = arith.constant 9.99999974E-6 : f32
    %43 = vector.broadcast %cst_15 : f32 to vector<16x1xf32>
    %44 = arith.addf %40, %43 : vector<16x1xf32>
    %45 = math.rsqrt %44 : vector<16x1xf32>
    %46 = vector.broadcast %45 : vector<16x1xf32> to vector<16x128xf32>
    %47 = arith.mulf %42, %46 : vector<16x128xf32>
    %c0_16 = arith.constant 0 : index
    %c0_17 = arith.constant 0 : index
    %48 = vector.load %arg4[%c0_16, %c0_17] : memref<1x128xf32, #tpu.memory_space<vmem>>, vector<1x128xf32>
    %49 = vector.broadcast %48 : vector<1x128xf32> to vector<16x128xf32>
    %50 = arith.mulf %47, %49 : vector<16x128xf32>
    %c0_18 = arith.constant 0 : index
    %c0_19 = arith.constant 0 : index
    %51 = vector.load %arg5[%c0_18, %c0_19] : memref<1x128xf32, #tpu.memory_space<vmem>>, vector<1x128xf32>
    %52 = vector.broadcast %51 : vector<1x128xf32> to vector<16x128xf32>
    %53 = arith.addf %50, %52 : vector<16x128xf32>
    %54 = arith.truncf %53 : vector<16x128xf32> to vector<16x128xbf16>
    %c0_20 = arith.constant 0 : index
    %c0_21 = arith.constant 0 : index
    %55 = vector.load %arg6[%c0_20, %c0_21] : memref<128x128xbf16, #tpu.memory_space<vmem>>, vector<128x128xbf16>
    %cst_22 = arith.constant dense<0.000000e+00> : vector<16x128xf32>
    %56 = tpu.matmul %54, %55, %cst_22 {dimension_numbers = #tpu.dot_dimension_numbers<[1], [0], [0], [1], [0, 0, 1, 1], [], []>} : vector<16x128xbf16>, vector<128x128xbf16>, vector<16x128xf32> -> vector<16x128xf32>
    %c0_23 = arith.constant 0 : index
    %c0_24 = arith.constant 0 : index
    %57 = vector.load %arg7[%c0_23, %c0_24] : memref<1x128xf32, #tpu.memory_space<vmem>>, vector<1x128xf32>
    %58 = vector.broadcast %57 : vector<1x128xf32> to vector<16x128xf32>
    %59 = arith.addf %56, %58 : vector<16x128xf32>
    %60 = arith.mulf %59, %59 : vector<16x128xf32>
    %61 = arith.mulf %59, %60 : vector<16x128xf32>
    %cst_25 = arith.constant 4.471500e-02 : f32
    %62 = vector.broadcast %cst_25 : f32 to vector<16x128xf32>
    %63 = arith.mulf %62, %61 : vector<16x128xf32>
    %64 = arith.addf %59, %63 : vector<16x128xf32>
    %cst_26 = arith.constant 0.797884583 : f32
    %65 = vector.broadcast %cst_26 : f32 to vector<16x128xf32>
    %66 = arith.mulf %65, %64 : vector<16x128xf32>
    %67 = math.tanh %66 : vector<16x128xf32>
    %cst_27 = arith.constant 1.000000e+00 : f32
    %68 = vector.broadcast %cst_27 : f32 to vector<16x128xf32>
    %69 = arith.addf %68, %67 : vector<16x128xf32>
    %cst_28 = arith.constant 5.000000e-01 : f32
    %70 = vector.broadcast %cst_28 : f32 to vector<16x128xf32>
    %71 = arith.mulf %70, %69 : vector<16x128xf32>
    %72 = arith.mulf %59, %71 : vector<16x128xf32>
    %73 = arith.truncf %72 : vector<16x128xf32> to vector<16x128xbf16>
    %c0_29 = arith.constant 0 : index
    %c0_30 = arith.constant 0 : index
    %74 = vector.load %arg8[%c0_29, %c0_30] : memref<128x128xbf16, #tpu.memory_space<vmem>>, vector<128x128xbf16>
    %cst_31 = arith.constant dense<0.000000e+00> : vector<16x128xf32>
    %75 = tpu.matmul %73, %74, %cst_31 {dimension_numbers = #tpu.dot_dimension_numbers<[1], [0], [0], [1], [0, 0, 1, 1], [], []>} : vector<16x128xbf16>, vector<128x128xbf16>, vector<16x128xf32> -> vector<16x128xf32>
    %c0_32 = arith.constant 0 : index
    %c0_33 = arith.constant 0 : index
    %76 = vector.load %arg9[%c0_32, %c0_33] : memref<1x128xf32, #tpu.memory_space<vmem>>, vector<1x128xf32>
    %77 = vector.broadcast %76 : vector<1x128xf32> to vector<16x128xf32>
    %78 = arith.addf %75, %77 : vector<16x128xf32>
    %79 = vector.shape_cast %78 : vector<16x128xf32> to vector<2x8x128xf32>
    %cst_34 = arith.constant dense<0.000000e+00> : vector<2x8xf32>
    %80 = vector.multi_reduction <add>, %79, %cst_34 [2] : vector<2x8x128xf32> to vector<2x8xf32>
    %81 = vector.shape_cast %80 : vector<2x8xf32> to vector<2x8x1xf32>
    %cst_35 = arith.constant 1.280000e+02 : f32
    %82 = vector.broadcast %cst_35 : f32 to vector<2x8x1xf32>
    %83 = arith.divf %81, %82 : vector<2x8x1xf32>
    %84 = vector.shape_cast %1 : vector<8x2xf32> to vector<1x8x2xf32>
    %85 = vector.broadcast %83 : vector<2x8x1xf32> to vector<2x8x2xf32>
    %86 = vector.broadcast %84 : vector<1x8x2xf32> to vector<2x8x2xf32>
    %87 = arith.mulf %85, %86 : vector<2x8x2xf32>
    %cst_36 = arith.constant dense<0.000000e+00> : vector<2x2xf32>
    %88 = vector.multi_reduction <add>, %87, %cst_36 [1] : vector<2x8x2xf32> to vector<2x2xf32>
    %89 = vector.shape_cast %88 : vector<2x2xf32> to vector<2x1x2xf32>
    %cst_37 = arith.constant 0.000000e+00 : f32
    %90 = vector.broadcast %cst_37 : f32 to vector<2x1x2xf32>
    %91 = arith.maximumf %89, %90 : vector<2x1x2xf32>
    %92 = vector.shape_cast %2 : vector<8x2xf32> to vector<1x8x2xf32>
    %93 = vector.broadcast %91 : vector<2x1x2xf32> to vector<2x8x2xf32>
    %94 = vector.broadcast %92 : vector<1x8x2xf32> to vector<2x8x2xf32>
    %95 = arith.mulf %93, %94 : vector<2x8x2xf32>
    %cst_38 = arith.constant dense<0.000000e+00> : vector<2x8xf32>
    %96 = vector.multi_reduction <add>, %95, %cst_38 [2] : vector<2x8x2xf32> to vector<2x8xf32>
    %97 = vector.shape_cast %96 : vector<2x8xf32> to vector<2x8x1xf32>
    %98 = arith.negf %97 : vector<2x8x1xf32>
    %99 = math.exp %98 : vector<2x8x1xf32>
    %cst_39 = arith.constant 1.000000e+00 : f32
    %100 = vector.broadcast %cst_39 : f32 to vector<2x8x1xf32>
    %101 = arith.addf %100, %99 : vector<2x8x1xf32>
    %102 = arith.divf %100, %101 : vector<2x8x1xf32>
    %103 = vector.broadcast %102 : vector<2x8x1xf32> to vector<2x8x128xf32>
    %104 = arith.mulf %79, %103 : vector<2x8x128xf32>
    %105 = arith.addf %28, %104 : vector<2x8x128xf32>
    %c0_40 = arith.constant 0 : index
    %c0_41 = arith.constant 0 : index
    %c0_42 = arith.constant 0 : index
    %106 = vector.load %arg10[%c0_40, %c0_41, %c0_42] : memref<2x8x128xf32, #tpu.memory_space<vmem>>, vector<2x8x128xf32>
    tpu.vector_store %arg10[%c0_40, %c0_41, %c0_42], %105 {strides = array<i32>} : memref<2x8x128xf32, #tpu.memory_space<vmem>>, vector<2x8x128xf32>,
    return
  }
  func.func @transform_0(%arg0: i32) -> (i32, i32, i32) {
    %c0_i32 = arith.constant 0 : i32
    %c0_i32_0 = arith.constant 0 : i32
    %c0_i32_1 = arith.constant 0 : i32
    return %arg0, %c0_i32, %c0_i32_0 : i32, i32, i32
  }
  func.func @transform_1(%arg0: i32) -> (i32, i32) {
    %c0_i32 = arith.constant 0 : i32
    %c0_i32_0 = arith.constant 0 : i32
    %c0_i32_1 = arith.constant 0 : i32
    return %c0_i32, %c0_i32_0 : i32, i32
  }
  func.func @transform_2(%arg0: i32) -> (i32, i32) {
    %c0_i32 = arith.constant 0 : i32
    %c0_i32_0 = arith.constant 0 : i32
    %c0_i32_1 = arith.constant 0 : i32
    return %c0_i32, %c0_i32_0 : i32, i32
  }
  func.func @transform_3(%arg0: i32) -> (i32, i32) {
    %c0_i32 = arith.constant 0 : i32
    %c0_i32_0 = arith.constant 0 : i32
    %c0_i32_1 = arith.constant 0 : i32
    return %c0_i32, %c0_i32_0 : i32, i32
  }
  func.func @transform_4(%arg0: i32) -> (i32, i32) {
    %c0_i32 = arith.constant 0 : i32
    %c0_i32_0 = arith.constant 0 : i32
    %c0_i32_1 = arith.constant 0 : i32
    return %c0_i32, %c0_i32_0 : i32, i32
  }
  func.func @transform_5(%arg0: i32) -> (i32, i32) {
    %c0_i32 = arith.constant 0 : i32
    %c0_i32_0 = arith.constant 0 : i32
    %c0_i32_1 = arith.constant 0 : i32
    return %c0_i32, %c0_i32_0 : i32, i32
  }
  func.func @transform_6(%arg0: i32) -> (i32, i32) {
    %c0_i32 = arith.constant 0 : i32
    %c0_i32_0 = arith.constant 0 : i32
    %c0_i32_1 = arith.constant 0 : i32
    return %c0_i32, %c0_i32_0 : i32, i32
  }
  func.func @transform_7(%arg0: i32) -> (i32, i32) {
    %c0_i32 = arith.constant 0 : i32
    %c0_i32_0 = arith.constant 0 : i32
    %c0_i32_1 = arith.constant 0 : i32
    return %c0_i32, %c0_i32_0 : i32, i32
  }
  func.func @transform_8(%arg0: i32) -> (i32, i32) {
    %c0_i32 = arith.constant 0 : i32
    %c0_i32_0 = arith.constant 0 : i32
    %c0_i32_1 = arith.constant 0 : i32
    return %c0_i32, %c0_i32_0 : i32, i32
  }
  func.func @transform_9(%arg0: i32) -> (i32, i32, i32) {
    %c0_i32 = arith.constant 0 : i32
    %c0_i32_0 = arith.constant 0 : i32
    %c0_i32_1 = arith.constant 0 : i32
    return %arg0, %c0_i32, %c0_i32_0 : i32, i32, i32
  }
}

</mosaic_0001>

<llo_original>
// kernel: tpu_custom_call.1
$region0: #{tpu_custom_call.1}
  #allocation0 [shape = 'u32[]', space=smem, size = 0x4, offset = 0x4, fixed_abs, tag = 'smem constant byte address 0x4 - core index']
  #allocation1 [shape = 'u32[144,128]{1,0:T(1,128)}', space=vmem, size = 0x12000, scoped, tag = 'internal scratch']
  %s0 = inlined_call_operand.vmem [shape: f32[2,8,128], index: 0, kind: input, shape index: {}]
  %s1 = inlined_call_operand.vmem [shape: f32[8,2], index: 1, kind: input, shape index: {}]
  %s2 = inlined_call_operand.vmem [shape: f32[8,2], index: 2, kind: input, shape index: {}]
  %s3 = inlined_call_operand.vmem [shape: f32[1,128], index: 3, kind: input, shape index: {}]
  %s4 = inlined_call_operand.vmem [shape: f32[1,128], index: 4, kind: input, shape index: {}]
  %s5 = inlined_call_operand.hbm [shape: bf16[128,128], index: 5, kind: input, shape index: {}]
  %s6 = inlined_call_operand.vmem [shape: f32[1,128], index: 6, kind: input, shape index: {}]
  %s7 = inlined_call_operand.hbm [shape: bf16[128,128], index: 7, kind: input, shape index: {}]
  %s8 = inlined_call_operand.vmem [shape: f32[1,128], index: 8, kind: input, shape index: {}]
  %s9 = inlined_call_operand.hbm [shape: f32[2,8,128], index: 9, kind: output, shape index: {}]
  %s10 = sld [smem:[#allocation0]]
  $region54: #{tpu_custom_call.1} parent=0
    _
  %s12 = ssub.s32 1, %s10
  %s13 = scalar_select 0, %s12, %s10
  $region1: #{tpu_custom_call.1} parent=0
    #allocation2 [shape = 'u8[32768]{0}', space=vmem, size = 0x8000, scoped, tag = 'input window, operand 5, single buffered']
    #allocation3 [shape = 's32[1]{0}', space=sflag, size = 0x4, scoped, tag = 'scoped memory for tpu_custom_call.1']
    #allocation4 [shape = 's32[1]{0}', space=sflag, size = 0x4, scoped, tag = 'scoped memory for tpu_custom_call.1']
    #allocation5 [shape = 'u8[32768]{0}', space=vmem, size = 0x8000, scoped, tag = 'input window, operand 7, single buffered']
    #allocation6 [shape = 's32[1]{0}', space=sflag, size = 0x4, scoped, tag = 'scoped memory for tpu_custom_call.1']
    #allocation7 [shape = 'u8[8192]{0}', space=vmem, size = 0x2000, scoped, tag = 'output window, operand 0, single buffered']
    %14 = vsyncpa [#allocation3], 0
    %15 = vsyncpa [#allocation6], 0
    %16 = vsyncpa [#allocation4], 0
    // Predicated region
    $region2: #{tpu_custom_call.1} parent=1 // pred_check
      _
    $region3: #{tpu_custom_call.1} parent=1 // pred_check_branch
      %18 = sbr.rel (0) target = $region5
    $region4: #{tpu_custom_call.1} parent=1 // pred_region
      _
    $region5: #{tpu_custom_call.1} parent=1 // pred_fallthru
      _
    // Predicated region
    $region6: #{tpu_custom_call.1} parent=1 // pred_check
      _
    $region7: #{tpu_custom_call.1} parent=1 // pred_check_branch
      %20 = sbr.rel (0) target = $region9
    $region8: #{tpu_custom_call.1} parent=1 // pred_region
      _
    $region9: #{tpu_custom_call.1} parent=1 // pred_fallthru
      _
    // Predicated region
    $region10: #{tpu_custom_call.1} parent=1 // pred_check
      _
    $region11: #{tpu_custom_call.1} parent=1 // pred_check_branch
      %22 = sbr.rel (0) target = $region13
    $region12: #{tpu_custom_call.1} parent=1 // pred_region
      _
    $region13: #{tpu_custom_call.1} parent=1 // pred_fallthru
      _
    // Predicated region
    $region14: #{tpu_custom_call.1} parent=1 // pred_check
      _
    $region15: #{tpu_custom_call.1} parent=1 // pred_check_branch
      %24 = sbr.rel (0) target = $region17
    $region16: #{tpu_custom_call.1} parent=1 // pred_region
      _
    $region17: #{tpu_custom_call.1} parent=1 // pred_fallthru
      _
    // Predicated region
    $region18: #{tpu_custom_call.1} parent=1 // pred_check
      _
    $region19: #{tpu_custom_call.1} parent=1 // pred_check_branch
      %26 = sbr.rel (0) target = $region21
    $region20: #{tpu_custom_call.1} parent=1 // pred_region
      _
    $region21: #{tpu_custom_call.1} parent=1 // pred_fallthru
      _
    // Predicated region
    $region22: #{tpu_custom_call.1} parent=1 // pred_check
      _
    $region23: #{tpu_custom_call.1} parent=1 // pred_check_branch
      %28 = sbr.rel (0) target = $region25
    $region24: #{tpu_custom_call.1} parent=1 // pred_region
      %s30 = ssub.s32 1024, 1024
      %31 = vsyncadd [#allocation3], %s30
      %s32 = sshll.u32 [#allocation2], 4
      %s33 = int_to_ptr.vmem [resolvable:$true] %s32
      %38 = dma.hbm_to_vmem [thread:$0]  %s5, 1024, %s33, [#allocation3], 64, 64, 4
    $region25: #{tpu_custom_call.1} parent=1 // pred_fallthru
      _
    // Predicated region
    $region26: #{tpu_custom_call.1} parent=1 // pred_check
      _
    $region27: #{tpu_custom_call.1} parent=1 // pred_check_branch
      %40 = sbr.rel (0) target = $region29
    $region28: #{tpu_custom_call.1} parent=1 // pred_region
      _
    $region29: #{tpu_custom_call.1} parent=1 // pred_fallthru
      _
    // Predicated region
    $region30: #{tpu_custom_call.1} parent=1 // pred_check
      _
    $region31: #{tpu_custom_call.1} parent=1 // pred_check_branch
      %42 = sbr.rel (0) target = $region33
    $region32: #{tpu_custom_call.1} parent=1 // pred_region
      %s44 = ssub.s32 1024, 1024
      %45 = vsyncadd [#allocation6], %s44
      %s46 = sshll.u32 [#allocation5], 4
      %s47 = int_to_ptr.vmem [resolvable:$true] %s46
      %52 = dma.hbm_to_vmem [thread:$0]  %s7, 1024, %s47, [#allocation6], 64, 64, 4
    $region33: #{tpu_custom_call.1} parent=1 // pred_fallthru
      _
    // Predicated region
    $region34: #{tpu_custom_call.1} parent=1 // pred_check
      _
    $region35: #{tpu_custom_call.1} parent=1 // pred_check_branch
      %54 = sbr.rel (0) target = $region37
    $region36: #{tpu_custom_call.1} parent=1 // pred_region
      _
    $region37: #{tpu_custom_call.1} parent=1 // pred_fallthru
      _
    // Predicated region
    $region38: #{tpu_custom_call.1} parent=1 // pred_check
      _
    $region39: #{tpu_custom_call.1} parent=1 // pred_check_branch
      %56 = sbr.rel (0) target = $region41
    $region40: #{tpu_custom_call.1} parent=1 // pred_region
      %57 = dma.done [#allocation3], 1024
    $region41: #{tpu_custom_call.1} parent=1 // pred_fallthru
      _
    // Predicated region
    $region42: #{tpu_custom_call.1} parent=1 // pred_check
      _
    $region43: #{tpu_custom_call.1} parent=1 // pred_check_branch
      %59 = sbr.rel (0) target = $region45
    $region44: #{tpu_custom_call.1} parent=1 // pred_region
      %60 = dma.done [#allocation6], 1024
    $region45: #{tpu_custom_call.1} parent=1 // pred_fallthru
      _
    %v62 = vld [vmem:[%s0] sm:$0xff]
    %v63 = vld [vmem:[%s0 + $0x8] sm:$0xff]
    %v64 = vld [vmem:[%s1] sm:$0xff]
    %v65 = vld [vmem:[%s2] sm:$0xff]
    %66 = vadd.xlane.f32.xlu0 %v62
    %v67 = vpop.xlane.xlu0 %66
    %68 = vadd.xlane.f32.xlu0 %v63
    %v69 = vpop.xlane.xlu0 %68
    %v70 = vrcp.pop 128.0
    %v71 = vmul.f32 %v67, %v70
    %v72 = vmul.f32 %v69, %v70
    %v73 = vmul.f32 %v71, %v64
    %v74 = vmul.f32 %v72, %v64
    %vm75 = vcmask 15360
    %v76 = vsel %vm75, %v73, 0.0
    %v77 = vrot.slane %v76, 4
    %v78 = vadd.f32 %v76, %v77
    %v79 = vrot.slane %v78, 2
    %v80 = vadd.f32 %v78, %v79
    %v81 = vrot.slane %v80, 1
    %v82 = vadd.f32 %v80, %v81
    %v83 = vsel %vm75, %v74, 0.0
    %v84 = vrot.slane %v83, 4
    %v85 = vadd.f32 %v83, %v84
    %v86 = vrot.slane %v85, 2
    %v87 = vadd.f32 %v85, %v86
    %v88 = vrot.slane %v87, 1
    %v89 = vadd.f32 %v87, %v88
    %v90 = vmax.f32 %v82, 0.0
    %v91 = vmax.f32 %v89, 0.0
    %v92 = vmul.f32 %v90, %v65
    %v93 = vmul.f32 %v91, %v65
    %v94 = vsel %vm75, %v92, 0.0
    %95 = vadd.xlane.f32.xlu0 %v94
    %v96 = vpop.xlane.xlu0 %95
    %v97 = vsel %vm75, %v93, 0.0
    %98 = vadd.xlane.f32.xlu0 %v97
    %v99 = vpop.xlane.xlu0 %98
    %v100 = vxor.u32 %v96, 2147483648
    %v101 = vxor.u32 %v99, 2147483648
    %v102 = vmul.f32 %v100, 1.442695
    %v103 = vpow.pop %v102
    %v104 = vmul.f32 %v101, 1.442695
    %v105 = vpow.pop %v104
    %v106 = vadd.f32 %v103, 1.0
    %v107 = vadd.f32 %v105, 1.0
    %v108 = vrcp.pop %v106
    %v109 = vmul.f32 1.0, %v108
    %v110 = vrcp.pop %v107
    %v111 = vmul.f32 1.0, %v110
    %v112 = vmul.f32 %v62, %v109
    %v113 = vmul.f32 %v63, %v111
    %v114 = vadd.f32 %v62, %v112
    %v115 = vadd.f32 %v63, %v113
    %116 = vadd.xlane.f32.xlu0 %v114
    %v117 = vpop.xlane.xlu0 %116
    %118 = vadd.xlane.f32.xlu0 %v115
    %v119 = vpop.xlane.xlu0 %118
    %v120 = vmul.f32 %v117, %v70
    %v121 = vmul.f32 %v119, %v70
    %v122 = vsub.f32 %v114, %v120
    %v123 = vsub.f32 %v115, %v121
    %v124 = vmul.f32 %v122, %v122
    %v125 = vmul.f32 %v123, %v123
    %126 = vadd.xlane.f32.xlu0 %v124
    %v127 = vpop.xlane.xlu0 %126
    %128 = vadd.xlane.f32.xlu0 %v125
    %v129 = vpop.xlane.xlu0 %128
    %v130 = vmul.f32 %v127, %v70
    %v131 = vmul.f32 %v129, %v70
    %v132 = vadd.f32 %v130, 1e-05
    %v133 = vadd.f32 %v131, 1e-05
    %v134 = vrsqrt.pop %v132
    %v135 = vrsqrt.pop %v133
    %v136 = vmul.f32 %v122, %v134
    %v137 = vmul.f32 %v123, %v135
    %v138 = vld [vmem:[%s3] sm:$0x1]
    %v140 = vlaneseq
    %v141 = vshrl.u32 %v140, 7
    %v142 = vsub.s32 0, %v141
    %v143 = vrot.slane %v138, %v142
    %v145 = vmul.f32 %v136, %v143
    %v146 = vmul.f32 %v137, %v143
    %v147 = vld [vmem:[%s4] sm:$0x1]
    %v149 = vlaneseq
    %v150 = vshrl.u32 %v149, 7
    %v151 = vsub.s32 0, %v150
    %v152 = vrot.slane %v147, %v151
    %v154 = vadd.f32 %v145, %v152
    %v155 = vadd.f32 %v146, %v152
    %v156 = vpack.c.bf16 %v155, %v154
    %v157 = vld [vmem:[#allocation2] sm:$0xf]
    %v158 = vld [vmem:[#allocation2 + $0x4] sm:$0xf]
    %v159 = vld [vmem:[#allocation2 + $0x8] sm:$0xf]
    %v160 = vld [vmem:[#allocation2 + $0xc] sm:$0xf]
    %v161 = vld [vmem:[#allocation2 + $0x10] sm:$0xf]
    %v162 = vld [vmem:[#allocation2 + $0x14] sm:$0xf]
    %v163 = vld [vmem:[#allocation2 + $0x18] sm:$0xf]
    %v164 = vld [vmem:[#allocation2 + $0x1c] sm:$0xf]
    %v165 = vld [vmem:[#allocation2 + $0x20] sm:$0xf]
    %v166 = vld [vmem:[#allocation2 + $0x24] sm:$0xf]
    %v167 = vld [vmem:[#allocation2 + $0x28] sm:$0xf]
    %v168 = vld [vmem:[#allocation2 + $0x2c] sm:$0xf]
    %v169 = vld [vmem:[#allocation2 + $0x30] sm:$0xf]
    %v170 = vld [vmem:[#allocation2 + $0x34] sm:$0xf]
    %v171 = vld [vmem:[#allocation2 + $0x38] sm:$0xf]
    %v172 = vld [vmem:[#allocation2 + $0x3c] sm:$0xf]
    %v173 = vld [vmem:[%s6] sm:$0x1]
    %v175 = vlaneseq
    %v176 = vshrl.u32 %v175, 7
    %v177 = vsub.s32 0, %v176
    %v178 = vrot.slane %v173, %v177
    %v196 = vunpack.c.l.b16 %v157
    %v197 = vunpack.c.l.b16 %v158
    %v198 = vunpack.c.l.b16 %v159
    %v199 = vunpack.c.l.b16 %v160
    %v200 = vunpack.c.l.b16 %v161
    %v201 = vunpack.c.l.b16 %v162
    %v202 = vunpack.c.l.b16 %v163
    %v203 = vunpack.c.l.b16 %v164
    %v204 = vunpack.c.l.b16 %v165
    %v205 = vunpack.c.l.b16 %v166
    %v206 = vunpack.c.l.b16 %v167
    %v207 = vunpack.c.l.b16 %v168
    %v208 = vunpack.c.l.b16 %v169
    %v209 = vunpack.c.l.b16 %v170
    %v210 = vunpack.c.l.b16 %v171
    %v211 = vunpack.c.l.b16 %v172
    %v212 = vpack.c.b16 %v197, %v196
    %v213 = vpack.c.b16 %v199, %v198
    %v214 = vpack.c.b16 %v201, %v200
    %v215 = vpack.c.b16 %v203, %v202
    %v216 = vpack.c.b16 %v205, %v204
    %v217 = vpack.c.b16 %v207, %v206
    %v218 = vpack.c.b16 %v209, %v208
    %v219 = vpack.c.b16 %v211, %v210
    %228 = vmatprep.subr.bf16.mxu0 0
    %229 = vmatpush1.bf16.msra.mxu0 %v219
    %230 = vmatprep.subr.bf16.mxu0 0
    %231 = vmatpush1.bf16.msra.mxu0 %v218
    %232 = vmatprep.subr.bf16.mxu0 0
    %233 = vmatpush1.bf16.msra.mxu0 %v217
    %234 = vmatprep.subr.bf16.mxu0 0
    %235 = vmatpush1.bf16.msra.mxu0 %v216
    %236 = vmatprep.subr.bf16.mxu0 0
    %237 = vmatpush1.bf16.msra.mxu0 %v215
    %238 = vmatprep.subr.bf16.mxu0 0
    %239 = vmatpush1.bf16.msra.mxu0 %v214
    %240 = vmatprep.subr.bf16.mxu0 0
    %241 = vmatpush1.bf16.msra.mxu0 %v213
    %242 = vmatprep.subr.bf16.mxu0 0
    %243 = vmatpush1.bf16.msra.mxu0 %v212
    %244 = vmatprep.subr.bf16.mxu0 0
    %245 = vmatpush2.bf16.msra.mxu0 0
    %246 = vmatprep.subr.bf16.mxu0 0
    %247 = vmatpush2.bf16.msra.mxu0 0
    %248 = vmatprep.subr.bf16.mxu0 0
    %249 = vmatpush2.bf16.msra.mxu0 0
    %250 = vmatprep.subr.bf16.mxu0 0
    %251 = vmatpush2.bf16.msra.mxu0 0
    %252 = vmatprep.subr.bf16.mxu0 0
    %253 = vmatpush2.bf16.msra.mxu0 0
    %254 = vmatprep.subr.bf16.mxu0 0
    %255 = vmatpush2.bf16.msra.mxu0 0
    %256 = vmatprep.subr.bf16.mxu0 0
    %257 = vmatpush2.bf16.msra.mxu0 0
    %258 = vmatprep.subr.bf16.mxu0 0
    %259 = vmatpush2.bf16.msra.mxu0 0
    %260 = vmatprep.mubr.bf16.mxu0 0
    %261 = vmatmul.mubr.bf16.gmra.mxu0 %v156
    %v262 = vpop.f32.mrf.mxu0
    %v263 = vadd.f32 %v178, %v262
    %v264 = vpop.f32.mrf.mxu0
    %v265 = vpop.f32.mrf.mxu0
    %v266 = vadd.f32 %v178, %v265
    %v267 = vpop.f32.mrf.mxu0
    %268 = vdwg.mxu0
    %v269 = vmul.f32 %v263, %v263
    %v270 = vmul.f32 %v266, %v266
    %v271 = vmul.f32 %v263, %v269
    %v272 = vmul.f32 %v266, %v270
    %v273 = vmul.f32 %v271, 0.044715
    %v274 = vmul.f32 %v272, 0.044715
    %v275 = vadd.f32 %v263, %v273
    %v276 = vadd.f32 %v266, %v274
    %v277 = vmul.f32 %v275, 0.7978846
    %v278 = vmul.f32 %v276, 0.7978846
    %v279 = vtanh.pop %v277
    %v280 = vtanh.pop %v278
    %v281 = vadd.f32 %v279, 1.0
    %v282 = vadd.f32 %v280, 1.0
    %v283 = vmul.f32 %v281, 0.5
    %v284 = vmul.f32 %v282, 0.5
    %v285 = vmul.f32 %v263, %v283
    %v286 = vmul.f32 %v266, %v284
    %v287 = vpack.c.bf16 %v286, %v285
    %v288 = vld [vmem:[#allocation5] sm:$0xf]
    %v289 = vld [vmem:[#allocation5 + $0x4] sm:$0xf]
    %v290 = vld [vmem:[#allocation5 + $0x8] sm:$0xf]
    %v291 = vld [vmem:[#allocation5 + $0xc] sm:$0xf]
    %v292 = vld [vmem:[#allocation5 + $0x10] sm:$0xf]
    %v293 = vld [vmem:[#allocation5 + $0x14] sm:$0xf]
    %v294 = vld [vmem:[#allocation5 + $0x18] sm:$0xf]
    %v295 = vld [vmem:[#allocation5 + $0x1c] sm:$0xf]
    %v296 = vld [vmem:[#allocation5 + $0x20] sm:$0xf]
    %v297 = vld [vmem:[#allocation5 + $0x24] sm:$0xf]
    %v298 = vld [vmem:[#allocation5 + $0x28] sm:$0xf]
    %v299 = vld [vmem:[#allocation5 + $0x2c] sm:$0xf]
    %v300 = vld [vmem:[#allocation5 + $0x30] sm:$0xf]
    %v301 = vld [vmem:[#allocation5 + $0x34] sm:$0xf]
    %v302 = vld [vmem:[#allocation5 + $0x38] sm:$0xf]
    %v303 = vld [vmem:[#allocation5 + $0x3c] sm:$0xf]
    %v304 = vld [vmem:[%s8] sm:$0x1]
    %v306 = vlaneseq
    %v307 = vshrl.u32 %v306, 7
    %v308 = vsub.s32 0, %v307
    %v309 = vrot.slane %v304, %v308
    %v327 = vunpack.c.l.b16 %v288
    %v328 = vunpack.c.l.b16 %v289
    %v329 = vunpack.c.l.b16 %v290
    %v330 = vunpack.c.l.b16 %v291
    %v331 = vunpack.c.l.b16 %v292
    %v332 = vunpack.c.l.b16 %v293
    %v333 = vunpack.c.l.b16 %v294
    %v334 = vunpack.c.l.b16 %v295
    %v335 = vunpack.c.l.b16 %v296
    %v336 = vunpack.c.l.b16 %v297
    %v337 = vunpack.c.l.b16 %v298
    %v338 = vunpack.c.l.b16 %v299
    %v339 = vunpack.c.l.b16 %v300
    %v340 = vunpack.c.l.b16 %v301
    %v341 = vunpack.c.l.b16 %v302
    %v342 = vunpack.c.l.b16 %v303
    %v343 = vpack.c.b16 %v328, %v327
    %v344 = vpack.c.b16 %v330, %v329
    %v345 = vpack.c.b16 %v332, %v331
    %v346 = vpack.c.b16 %v334, %v333
    %v347 = vpack.c.b16 %v336, %v335
    %v348 = vpack.c.b16 %v338, %v337
    %v349 = vpack.c.b16 %v340, %v339
    %v350 = vpack.c.b16 %v342, %v341
    %359 = vmatprep.subr.bf16.mxu0 0
    %360 = vmatpush1.bf16.msra.mxu0 %v350
    %361 = vmatprep.subr.bf16.mxu0 0
    %362 = vmatpush1.bf16.msra.mxu0 %v349
    %363 = vmatprep.subr.bf16.mxu0 0
    %364 = vmatpush1.bf16.msra.mxu0 %v348
    %365 = vmatprep.subr.bf16.mxu0 0
    %366 = vmatpush1.bf16.msra.mxu0 %v347
    %367 = vmatprep.subr.bf16.mxu0 0
    %368 = vmatpush1.bf16.msra.mxu0 %v346
    %369 = vmatprep.subr.bf16.mxu0 0
    %370 = vmatpush1.bf16.msra.mxu0 %v345
    %371 = vmatprep.subr.bf16.mxu0 0
    %372 = vmatpush1.bf16.msra.mxu0 %v344
    %373 = vmatprep.subr.bf16.mxu0 0
    %374 = vmatpush1.bf16.msra.mxu0 %v343
    %375 = vmatprep.subr.bf16.mxu0 0
    %376 = vmatpush2.bf16.msra.mxu0 0
    %377 = vmatprep.subr.bf16.mxu0 0
    %378 = vmatpush2.bf16.msra.mxu0 0
    %379 = vmatprep.subr.bf16.mxu0 0
    %380 = vmatpush2.bf16.msra.mxu0 0
    %381 = vmatprep.subr.bf16.mxu0 0
    %382 = vmatpush2.bf16.msra.mxu0 0
    %383 = vmatprep.subr.bf16.mxu0 0
    %384 = vmatpush2.bf16.msra.mxu0 0
    %385 = vmatprep.subr.bf16.mxu0 0
    %386 = vmatpush2.bf16.msra.mxu0 0
    %387 = vmatprep.subr.bf16.mxu0 0
    %388 = vmatpush2.bf16.msra.mxu0 0
    %389 = vmatprep.subr.bf16.mxu0 0
    %390 = vmatpush2.bf16.msra.mxu0 0
    %391 = vmatprep.mubr.bf16.mxu0 0
    %392 = vmatmul.mubr.bf16.gmra.mxu0 %v287
    %v393 = vpop.f32.mrf.mxu0
    %v394 = vadd.f32 %v309, %v393
    %v395 = vpop.f32.mrf.mxu0
    %v396 = vpop.f32.mrf.mxu0
    %v397 = vadd.f32 %v309, %v396
    %v398 = vpop.f32.mrf.mxu0
    %399 = vdwg.mxu0
    %400 = vadd.xlane.f32.xlu0 %v394
    %v401 = vpop.xlane.xlu0 %400
    %402 = vadd.xlane.f32.xlu0 %v397
    %v403 = vpop.xlane.xlu0 %402
    %v404 = vmul.f32 %v401, %v70
    %v405 = vmul.f32 %v403, %v70
    %v406 = vmul.f32 %v404, %v64
    %v407 = vmul.f32 %v405, %v64
    %v408 = vsel %vm75, %v406, 0.0
    %v409 = vrot.slane %v408, 4
    %v410 = vadd.f32 %v408, %v409
    %v411 = vrot.slane %v410, 2
    %v412 = vadd.f32 %v410, %v411
    %v413 = vrot.slane %v412, 1
    %v414 = vadd.f32 %v412, %v413
    %v415 = vsel %vm75, %v407, 0.0
    %v416 = vrot.slane %v415, 4
    %v417 = vadd.f32 %v415, %v416
    %v418 = vrot.slane %v417, 2
    %v419 = vadd.f32 %v417, %v418
    %v420 = vrot.slane %v419, 1
    %v421 = vadd.f32 %v419, %v420
    %v422 = vmax.f32 %v414, 0.0
    %v423 = vmax.f32 %v421, 0.0
    %v424 = vmul.f32 %v422, %v65
    %v425 = vmul.f32 %v423, %v65
    %v426 = vsel %vm75, %v424, 0.0
    %427 = vadd.xlane.f32.xlu0 %v426
    %v428 = vpop.xlane.xlu0 %427
    %v429 = vsel %vm75, %v425, 0.0
    %430 = vadd.xlane.f32.xlu0 %v429
    %v431 = vpop.xlane.xlu0 %430
    %v432 = vxor.u32 %v428, 2147483648
    %v433 = vxor.u32 %v431, 2147483648
    %v434 = vmul.f32 %v432, 1.442695
    %v435 = vpow.pop %v434
    %v436 = vmul.f32 %v433, 1.442695
    %v437 = vpow.pop %v436
    %v438 = vadd.f32 %v435, 1.0
    %v439 = vadd.f32 %v437, 1.0
    %v440 = vrcp.pop %v438
    %v441 = vmul.f32 1.0, %v440
    %v442 = vrcp.pop %v439
    %v443 = vmul.f32 1.0, %v442
    %v444 = vmul.f32 %v394, %v441
    %v445 = vmul.f32 %v397, %v443
    %v446 = vadd.f32 %v114, %v444
    %v447 = vadd.f32 %v115, %v445
    %448 = vst [vmem:[#allocation7] sm:$0xff] %v446
    %449 = vst [vmem:[#allocation7 + $0x8] sm:$0xff] %v447
    // Predicated region
    $region46: #{tpu_custom_call.1} parent=1 // pred_check
      _
    $region47: #{tpu_custom_call.1} parent=1 // pred_check_branch
      %451 = sbr.rel (0) target = $region49
    $region48: #{tpu_custom_call.1} parent=1 // pred_region
      %s453 = ssub.s32 256, 256
      %454 = vsyncadd [#allocation4], %s453
      %s455 = sshll.u32 [#allocation7], 4
      %s456 = int_to_ptr.vmem [resolvable:$true] %s455
      %461 = dma.vmem_to_hbm [thread:$0]  %s456, 256, %s9, [#allocation4], 128, 128, 8
    $region49: #{tpu_custom_call.1} parent=1 // pred_fallthru
      _
    // Predicated region
    $region50: #{tpu_custom_call.1} parent=1 // pred_check
      _
    $region51: #{tpu_custom_call.1} parent=1 // pred_check_branch
      %463 = sbr.rel (0) target = $region53
    $region52: #{tpu_custom_call.1} parent=1 // pred_region
      %464 = dma.done [#allocation4], 256
    $region53: #{tpu_custom_call.1} parent=1 // pred_fallthru
      _
    %465 = vsyncpa [#allocation3], 1
    %466 = vsyncpa [#allocation6], 1
    %467 = vsyncpa [#allocation4], 1

// kernel: tpu_custom_call.1
$region0: #{tpu_custom_call.1}
  #allocation0 [shape = 'u32[]', space=smem, size = 0x4, offset = 0x4, fixed_abs, tag = 'smem constant byte address 0x4 - core index']
  #allocation1 [shape = 'u32[144,128]{1,0:T(1,128)}', space=vmem, size = 0x12000, scoped, tag = 'internal scratch']
  %s0 = inlined_call_operand.vmem [shape: f32[2,8,128], index: 0, kind: input, shape index: {}]
  %s1 = inlined_call_operand.vmem [shape: f32[8,2], index: 1, kind: input, shape index: {}]
  %s2 = inlined_call_operand.vmem [shape: f32[8,2], index: 2, kind: input, shape index: {}]
  %s3 = inlined_call_operand.vmem [shape: f32[1,128], index: 3, kind: input, shape index: {}]
  %s4 = inlined_call_operand.vmem [shape: f32[1,128], index: 4, kind: input, shape index: {}]
  %s5 = inlined_call_operand.hbm [shape: bf16[128,128], index: 5, kind: input, shape index: {}]
  %s6 = inlined_call_operand.vmem [shape: f32[1,128], index: 6, kind: input, shape index: {}]
  %s7 = inlined_call_operand.hbm [shape: bf16[128,128], index: 7, kind: input, shape index: {}]
  %s8 = inlined_call_operand.vmem [shape: f32[1,128], index: 8, kind: input, shape index: {}]
  %s9 = inlined_call_operand.hbm [shape: f32[2,8,128], index: 9, kind: output, shape index: {}]
  %s10 = sld [smem:[#allocation0]]
  $region54: #{tpu_custom_call.1} parent=0
    _
  %s12 = ssub.s32 1, %s10
  %s13 = scalar_select 0, %s12, %s10
  $region1: #{tpu_custom_call.1} parent=0
    #allocation2 [shape = 'u8[32768]{0}', space=vmem, size = 0x8000, scoped, tag = 'input window, operand 5, single buffered']
    #allocation3 [shape = 's32[1]{0}', space=sflag, size = 0x4, scoped, tag = 'scoped memory for tpu_custom_call.1']
    #allocation4 [shape = 's32[1]{0}', space=sflag, size = 0x4, scoped, tag = 'scoped memory for tpu_custom_call.1']
    #allocation5 [shape = 'u8[32768]{0}', space=vmem, size = 0x8000, scoped, tag = 'input window, operand 7, single buffered']
    #allocation6 [shape = 's32[1]{0}', space=sflag, size = 0x4, scoped, tag = 'scoped memory for tpu_custom_call.1']
    #allocation7 [shape = 'u8[8192]{0}', space=vmem, size = 0x2000, scoped, tag = 'output window, operand 0, single buffered']
    %14 = vsyncpa [#allocation3], 0
    %15 = vsyncpa [#allocation6], 0
    %16 = vsyncpa [#allocation4], 0
    // Predicated region
    $region2: #{tpu_custom_call.1} parent=1 // pred_check
      _
    $region3: #{tpu_custom_call.1} parent=1 // pred_check_branch
      %18 = sbr.rel (0) target = $region5
    $region4: #{tpu_custom_call.1} parent=1 // pred_region
      _
    $region5: #{tpu_custom_call.1} parent=1 // pred_fallthru
      _
    // Predicated region
    $region6: #{tpu_custom_call.1} parent=1 // pred_check
      _
    $region7: #{tpu_custom_call.1} parent=1 // pred_check_branch
      %20 = sbr.rel (0) target = $region9
    $region8: #{tpu_custom_call.1} parent=1 // pred_region
      _
    $region9: #{tpu_custom_call.1} parent=1 // pred_fallthru
      _
    // Predicated region
    $region10: #{tpu_custom_call.1} parent=1 // pred_check
      _
    $region11: #{tpu_custom_call.1} parent=1 // pred_check_branch
      %22 = sbr.rel (0) target = $region13
    $region12: #{tpu_custom_call.1} parent=1 // pred_region
      _
    $region13: #{tpu_custom_call.1} parent=1 // pred_fallthru
      _
    // Predicated region
    $region14: #{tpu_custom_call.1} parent=1 // pred_check
      _
    $region15: #{tpu_custom_call.1} parent=1 // pred_check_branch
      %24 = sbr.rel (0) target = $region17
    $region16: #{tpu_custom_call.1} parent=1 // pred_region
      _
    $region17: #{tpu_custom_call.1} parent=1 // pred_fallthru
      _
    // Predicated region
    $region18: #{tpu_custom_call.1} parent=1 // pred_check
      _
    $region19: #{tpu_custom_call.1} parent=1 // pred_check_branch
      %26 = sbr.rel (0) target = $region21
    $region20: #{tpu_custom_call.1} parent=1 // pred_region
      _
    $region21: #{tpu_custom_call.1} parent=1 // pred_fallthru
      _
    // Predicated region
    $region22: #{tpu_custom_call.1} parent=1 // pred_check
      _
    $region23: #{tpu_custom_call.1} parent=1 // pred_check_branch
      %28 = sbr.rel (0) target = $region25
    $region24: #{tpu_custom_call.1} parent=1 // pred_region
      %s30 = ssub.s32 1024, 1024
      %31 = vsyncadd [#allocation3], %s30
      %s32 = sshll.u32 [#allocation2], 4
      %s33 = int_to_ptr.vmem [resolvable:$true] %s32
      %38 = dma.hbm_to_vmem [thread:$0]  %s5, 1024, %s33, [#allocation3], 64, 64, 4
    $region25: #{tpu_custom_call.1} parent=1 // pred_fallthru
      _
    // Predicated region
    $region26: #{tpu_custom_call.1} parent=1 // pred_check
      _
    $region27: #{tpu_custom_call.1} parent=1 // pred_check_branch
      %40 = sbr.rel (0) target = $region29
    $region28: #{tpu_custom_call.1} parent=1 // pred_region
      _
    $region29: #{tpu_custom_call.1} parent=1 // pred_fallthru
      _
    // Predicated region
    $region30: #{tpu_custom_call.1} parent=1 // pred_check
      _
    $region31: #{tpu_custom_call.1} parent=1 // pred_check_branch
      %42 = sbr.rel (0) target = $region33
    $region32: #{tpu_custom_call.1} parent=1 // pred_region
      %s44 = ssub.s32 1024, 1024
      %45 = vsyncadd [#allocation6], %s44
      %s46 = sshll.u32 [#allocation5], 4
      %s47 = int_to_ptr.vmem [resolvable:$true] %s46
      %52 = dma.hbm_to_vmem [thread:$0]  %s7, 1024, %s47, [#allocation6], 64, 64, 4
    $region33: #{tpu_custom_call.1} parent=1 // pred_fallthru
      _
    // Predicated region
    $region34: #{tpu_custom_call.1} parent=1 // pred_check
      _
    $region35: #{tpu_custom_call.1} parent=1 // pred_check_branch
      %54 = sbr.rel (0) target = $region37
    $region36: #{tpu_custom_call.1} parent=1 // pred_region
      _
    $region37: #{tpu_custom_call.1} parent=1 // pred_fallthru
      _
    // Predicated region
    $region38: #{tpu_custom_call.1} parent=1 // pred_check
      _
    $region39: #{tpu_custom_call.1} parent=1 // pred_check_branch
      %56 = sbr.rel (0) target = $region41
    $region40: #{tpu_custom_call.1} parent=1 // pred_region
      %57 = dma.done [#allocation3], 1024
    $region41: #{tpu_custom_call.1} parent=1 // pred_fallthru
      _
    // Predicated region
    $region42: #{tpu_custom_call.1} parent=1 // pred_check
      _
    $region43: #{tpu_custom_call.1} parent=1 // pred_check_branch
      %59 = sbr.rel (0) target = $region45
    $region44: #{tpu_custom_call.1} parent=1 // pred_region
      %60 = dma.done [#allocation6], 1024
    $region45: #{tpu_custom_call.1} parent=1 // pred_fallthru
      _
    %v62 = vld [vmem:[%s0] sm:$0xff]
    %v63 = vld [vmem:[%s0 + $0x8] sm:$0xff]
    %v64 = vld [vmem:[%s1] sm:$0xff]
    %v65 = vld [vmem:[%s2] sm:$0xff]
    %66 = vadd.xlane.f32.xlu0 %v62
    %v67 = vpop.xlane.xlu0 %66
    %68 = vadd.xlane.f32.xlu0 %v63
    %v69 = vpop.xlane.xlu0 %68
    %v70 = vrcp.pop 128.0
    %v71 = vmul.f32 %v67, %v70
    %v72 = vmul.f32 %v69, %v70
    %v73 = vmul.f32 %v71, %v64
    %v74 = vmul.f32 %v72, %v64
    %vm75 = vcmask 15360
    %v76 = vsel %vm75, %v73, 0.0
    %v77 = vrot.slane %v76, 4
    %v78 = vadd.f32 %v76, %v77
    %v79 = vrot.slane %v78, 2
    %v80 = vadd.f32 %v78, %v79
    %v81 = vrot.slane %v80, 1
    %v82 = vadd.f32 %v80, %v81
    %v83 = vsel %vm75, %v74, 0.0
    %v84 = vrot.slane %v83, 4
    %v85 = vadd.f32 %v83, %v84
    %v86 = vrot.slane %v85, 2
    %v87 = vadd.f32 %v85, %v86
    %v88 = vrot.slane %v87, 1
    %v89 = vadd.f32 %v87, %v88
    %v90 = vmax.f32 %v82, 0.0
    %v91 = vmax.f32 %v89, 0.0
    %v92 = vmul.f32 %v90, %v65
    %v93 = vmul.f32 %v91, %v65
    %v94 = vsel %vm75, %v92, 0.0
    %95 = vadd.xlane.f32.xlu0 %v94
    %v96 = vpop.xlane.xlu0 %95
    %v97 = vsel %vm75, %v93, 0.0
    %98 = vadd.xlane.f32.xlu0 %v97
    %v99 = vpop.xlane.xlu0 %98
    %v100 = vxor.u32 %v96, 2147483648
    %v101 = vxor.u32 %v99, 2147483648
    %v102 = vmul.f32 %v100, 1.442695
    %v103 = vpow.pop %v102
    %v104 = vmul.f32 %v101, 1.442695
    %v105 = vpow.pop %v104
    %v106 = vadd.f32 %v103, 1.0
    %v107 = vadd.f32 %v105, 1.0
    %v108 = vrcp.pop %v106
    %v109 = vmul.f32 1.0, %v108
    %v110 = vrcp.pop %v107
    %v111 = vmul.f32 1.0, %v110
    %v112 = vmul.f32 %v62, %v109
    %v113 = vmul.f32 %v63, %v111
    %v114 = vadd.f32 %v62, %v112
    %v115 = vadd.f32 %v63, %v113
    %116 = vadd.xlane.f32.xlu0 %v114
    %v117 = vpop.xlane.xlu0 %116
    %118 = vadd.xlane.f32.xlu0 %v115
    %v119 = vpop.xlane.xlu0 %118
    %v120 = vmul.f32 %v117, %v70
    %v121 = vmul.f32 %v119, %v70
    %v122 = vsub.f32 %v114, %v120
    %v123 = vsub.f32 %v115, %v121
    %v124 = vmul.f32 %v122, %v122
    %v125 = vmul.f32 %v123, %v123
    %126 = vadd.xlane.f32.xlu0 %v124
    %v127 = vpop.xlane.xlu0 %126
    %128 = vadd.xlane.f32.xlu0 %v125
    %v129 = vpop.xlane.xlu0 %128
    %v130 = vmul.f32 %v127, %v70
    %v131 = vmul.f32 %v129, %v70
    %v132 = vadd.f32 %v130, 1e-05
    %v133 = vadd.f32 %v131, 1e-05
    %v134 = vrsqrt.pop %v132
    %v135 = vrsqrt.pop %v133
    %v136 = vmul.f32 %v122, %v134
    %v137 = vmul.f32 %v123, %v135
    %v138 = vld [vmem:[%s3] sm:$0x1]
    %v140 = vlaneseq
    %v141 = vshrl.u32 %v140, 7
    %v142 = vsub.s32 0, %v141
    %v143 = vrot.slane %v138, %v142
    %v145 = vmul.f32 %v136, %v143
    %v146 = vmul.f32 %v137, %v143
    %v147 = vld [vmem:[%s4] sm:$0x1]
    %v149 = vlaneseq
    %v150 = vshrl.u32 %v149, 7
    %v151 = vsub.s32 0, %v150
    %v152 = vrot.slane %v147, %v151
    %v154 = vadd.f32 %v145, %v152
    %v155 = vadd.f32 %v146, %v152
    %v156 = vpack.c.bf16 %v155, %v154
    %v157 = vld [vmem:[#allocation2] sm:$0xf]
    %v158 = vld [vmem:[#allocation2 + $0x4] sm:$0xf]
    %v159 = vld [vmem:[#allocation2 + $0x8] sm:$0xf]
    %v160 = vld [vmem:[#allocation2 + $0xc] sm:$0xf]
    %v161 = vld [vmem:[#allocation2 + $0x10] sm:$0xf]
    %v162 = vld [vmem:[#allocation2 + $0x14] sm:$0xf]
    %v163 = vld [vmem:[#allocation2 + $0x18] sm:$0xf]
    %v164 = vld [vmem:[#allocation2 + $0x1c] sm:$0xf]
    %v165 = vld [vmem:[#allocation2 + $0x20] sm:$0xf]
    %v166 = vld [vmem:[#allocation2 + $0x24] sm:$0xf]
    %v167 = vld [vmem:[#allocation2 + $0x28] sm:$0xf]
    %v168 = vld [vmem:[#allocation2 + $0x2c] sm:$0xf]
    %v169 = vld [vmem:[#allocation2 + $0x30] sm:$0xf]
    %v170 = vld [vmem:[#allocation2 + $0x34] sm:$0xf]
    %v171 = vld [vmem:[#allocation2 + $0x38] sm:$0xf]
    %v172 = vld [vmem:[#allocation2 + $0x3c] sm:$0xf]
    %v173 = vld [vmem:[%s6] sm:$0x1]
    %v175 = vlaneseq
    %v176 = vshrl.u32 %v175, 7
    %v177 = vsub.s32 0, %v176
    %v178 = vrot.slane %v173, %v177
    %v196 = vunpack.c.l.b16 %v157
    %v197 = vunpack.c.l.b16 %v158
    %v198 = vunpack.c.l.b16 %v159
    %v199 = vunpack.c.l.b16 %v160
    %v200 = vunpack.c.l.b16 %v161
    %v201 = vunpack.c.l.b16 %v162
    %v202 = vunpack.c.l.b16 %v163
    %v203 = vunpack.c.l.b16 %v164
    %v204 = vunpack.c.l.b16 %v165
    %v205 = vunpack.c.l.b16 %v166
    %v206 = vunpack.c.l.b16 %v167
    %v207 = vunpack.c.l.b16 %v168
    %v208 = vunpack.c.l.b16 %v169
    %v209 = vunpack.c.l.b16 %v170
    %v210 = vunpack.c.l.b16 %v171
    %v211 = vunpack.c.l.b16 %v172
    %v212 = vpack.c.b16 %v197, %v196
    %v213 = vpack.c.b16 %v199, %v198
    %v214 = vpack.c.b16 %v201, %v200
    %v215 = vpack.c.b16 %v203, %v202
    %v216 = vpack.c.b16 %v205, %v204
    %v217 = vpack.c.b16 %v207, %v206
    %v218 = vpack.c.b16 %v209, %v208
    %v219 = vpack.c.b16 %v211, %v210
    %228 = vmatprep.subr.bf16.mxu0 0
    %229 = vmatpush1.bf16.msra.mxu0 %v219
    %230 = vmatprep.subr.bf16.mxu0 0
    %231 = vmatpush1.bf16.msra.mxu0 %v218
    %232 = vmatprep.subr.bf16.mxu0 0
    %233 = vmatpush1.bf16.msra.mxu0 %v217
    %234 = vmatprep.subr.bf16.mxu0 0
    %235 = vmatpush1.bf16.msra.mxu0 %v216
    %236 = vmatprep.subr.bf16.mxu0 0
    %237 = vmatpush1.bf16.msra.mxu0 %v215
    %238 = vmatprep.subr.bf16.mxu0 0
    %239 = vmatpush1.bf16.msra.mxu0 %v214
    %240 = vmatprep.subr.bf16.mxu0 0
    %241 = vmatpush1.bf16.msra.mxu0 %v213
    %242 = vmatprep.subr.bf16.mxu0 0
    %243 = vmatpush1.bf16.msra.mxu0 %v212
    %244 = vmatprep.subr.bf16.mxu0 0
    %245 = vmatpush2.bf16.msra.mxu0 0
    %246 = vmatprep.subr.bf16.mxu0 0
    %247 = vmatpush2.bf16.msra.mxu0 0
    %248 = vmatprep.subr.bf16.mxu0 0
    %249 = vmatpush2.bf16.msra.mxu0 0
    %250 = vmatprep.subr.bf16.mxu0 0
    %251 = vmatpush2.bf16.msra.mxu0 0
    %252 = vmatprep.subr.bf16.mxu0 0
    %253 = vmatpush2.bf16.msra.mxu0 0
    %254 = vmatprep.subr.bf16.mxu0 0
    %255 = vmatpush2.bf16.msra.mxu0 0
    %256 = vmatprep.subr.bf16.mxu0 0
    %257 = vmatpush2.bf16.msra.mxu0 0
    %258 = vmatprep.subr.bf16.mxu0 0
    %259 = vmatpush2.bf16.msra.mxu0 0
    %260 = vmatprep.mubr.bf16.mxu0 0
    %261 = vmatmul.mubr.bf16.gmra.mxu0 %v156
    %v262 = vpop.f32.mrf.mxu0
    %v263 = vadd.f32 %v178, %v262
    %v264 = vpop.f32.mrf.mxu0
    %v265 = vpop.f32.mrf.mxu0
    %v266 = vadd.f32 %v178, %v265
    %v267 = vpop.f32.mrf.mxu0
    %268 = vdwg.mxu0
    %v269 = vmul.f32 %v263, %v263
    %v270 = vmul.f32 %v266, %v266
    %v271 = vmul.f32 %v263, %v269
    %v272 = vmul.f32 %v266, %v270
    %v273 = vmul.f32 %v271, 0.044715
    %v274 = vmul.f32 %v272, 0.044715
    %v275 = vadd.f32 %v263, %v273
    %v276 = vadd.f32 %v266, %v274
    %v277 = vmul.f32 %v275, 0.7978846
    %v278 = vmul.f32 %v276, 0.7978846
    %v279 = vtanh.pop %v277
    %v280 = vtanh.pop %v278
    %v281 = vadd.f32 %v279, 1.0
    %v282 = vadd.f32 %v280, 1.0
    %v283 = vmul.f32 %v281, 0.5
    %v284 = vmul.f32 %v282, 0.5
    %v285 = vmul.f32 %v263, %v283
    %v286 = vmul.f32 %v266, %v284
    %v287 = vpack.c.bf16 %v286, %v285
    %v288 = vld [vmem:[#allocation5] sm:$0xf]
    %v289 = vld [vmem:[#allocation5 + $0x4] sm:$0xf]
    %v290 = vld [vmem:[#allocation5 + $0x8] sm:$0xf]
    %v291 = vld [vmem:[#allocation5 + $0xc] sm:$0xf]
    %v292 = vld [vmem:[#allocation5 + $0x10] sm:$0xf]
    %v293 = vld [vmem:[#allocation5 + $0x14] sm:$0xf]
    %v294 = vld [vmem:[#allocation5 + $0x18] sm:$0xf]
    %v295 = vld [vmem:[#allocation5 + $0x1c] sm:$0xf]
    %v296 = vld [vmem:[#allocation5 + $0x20] sm:$0xf]
    %v297 = vld [vmem:[#allocation5 + $0x24] sm:$0xf]
    %v298 = vld [vmem:[#allocation5 + $0x28] sm:$0xf]
    %v299 = vld [vmem:[#allocation5 + $0x2c] sm:$0xf]
    %v300 = vld [vmem:[#allocation5 + $0x30] sm:$0xf]
    %v301 = vld [vmem:[#allocation5 + $0x34] sm:$0xf]
    %v302 = vld [vmem:[#allocation5 + $0x38] sm:$0xf]
    %v303 = vld [vmem:[#allocation5 + $0x3c] sm:$0xf]
    %v304 = vld [vmem:[%s8] sm:$0x1]
    %v306 = vlaneseq
    %v307 = vshrl.u32 %v306, 7
    %v308 = vsub.s32 0, %v307
    %v309 = vrot.slane %v304, %v308
    %v327 = vunpack.c.l.b16 %v288
    %v328 = vunpack.c.l.b16 %v289
    %v329 = vunpack.c.l.b16 %v290
    %v330 = vunpack.c.l.b16 %v291
    %v331 = vunpack.c.l.b16 %v292
    %v332 = vunpack.c.l.b16 %v293
    %v333 = vunpack.c.l.b16 %v294
    %v334 = vunpack.c.l.b16 %v295
    %v335 = vunpack.c.l.b16 %v296
    %v336 = vunpack.c.l.b16 %v297
    %v337 = vunpack.c.l.b16 %v298
    %v338 = vunpack.c.l.b16 %v299
    %v339 = vunpack.c.l.b16 %v300
    %v340 = vunpack.c.l.b16 %v301
    %v341 = vunpack.c.l.b16 %v302
    %v342 = vunpack.c.l.b16 %v303
    %v343 = vpack.c.b16 %v328, %v327
    %v344 = vpack.c.b16 %v330, %v329
    %v345 = vpack.c.b16 %v332, %v331
    %v346 = vpack.c.b16 %v334, %v333
    %v347 = vpack.c.b16 %v336, %v335
    %v348 = vpack.c.b16 %v338, %v337
    %v349 = vpack.c.b16 %v340, %v339
    %v350 = vpack.c.b16 %v342, %v341
    %359 = vmatprep.subr.bf16.mxu0 0
    %360 = vmatpush1.bf16.msra.mxu0 %v350
    %361 = vmatprep.subr.bf16.mxu0 0
    %362 = vmatpush1.bf16.msra.mxu0 %v349
    %363 = vmatprep.subr.bf16.mxu0 0
    %364 = vmatpush1.bf16.msra.mxu0 %v348
    %365 = vmatprep.subr.bf16.mxu0 0
    %366 = vmatpush1.bf16.msra.mxu0 %v347
    %367 = vmatprep.subr.bf16.mxu0 0
    %368 = vmatpush1.bf16.msra.mxu0 %v346
    %369 = vmatprep.subr.bf16.mxu0 0
    %370 = vmatpush1.bf16.msra.mxu0 %v345
    %371 = vmatprep.subr.bf16.mxu0 0
    %372 = vmatpush1.bf16.msra.mxu0 %v344
    %373 = vmatprep.subr.bf16.mxu0 0
    %374 = vmatpush1.bf16.msra.mxu0 %v343
    %375 = vmatprep.subr.bf16.mxu0 0
    %376 = vmatpush2.bf16.msra.mxu0 0
    %377 = vmatprep.subr.bf16.mxu0 0
    %378 = vmatpush2.bf16.msra.mxu0 0
    %379 = vmatprep.subr.bf16.mxu0 0
    %380 = vmatpush2.bf16.msra.mxu0 0
    %381 = vmatprep.subr.bf16.mxu0 0
    %382 = vmatpush2.bf16.msra.mxu0 0
    %383 = vmatprep.subr.bf16.mxu0 0
    %384 = vmatpush2.bf16.msra.mxu0 0
    %385 = vmatprep.subr.bf16.mxu0 0
    %386 = vmatpush2.bf16.msra.mxu0 0
    %387 = vmatprep.subr.bf16.mxu0 0
    %388 = vmatpush2.bf16.msra.mxu0 0
    %389 = vmatprep.subr.bf16.mxu0 0
    %390 = vmatpush2.bf16.msra.mxu0 0
    %391 = vmatprep.mubr.bf16.mxu0 0
    %392 = vmatmul.mubr.bf16.gmra.mxu0 %v287
    %v393 = vpop.f32.mrf.mxu0
    %v394 = vadd.f32 %v309, %v393
    %v395 = vpop.f32.mrf.mxu0
    %v396 = vpop.f32.mrf.mxu0
    %v397 = vadd.f32 %v309, %v396
    %v398 = vpop.f32.mrf.mxu0
    %399 = vdwg.mxu0
    %400 = vadd.xlane.f32.xlu0 %v394
    %v401 = vpop.xlane.xlu0 %400
    %402 = vadd.xlane.f32.xlu0 %v397
    %v403 = vpop.xlane.xlu0 %402
    %v404 = vmul.f32 %v401, %v70
    %v405 = vmul.f32 %v403, %v70
    %v406 = vmul.f32 %v404, %v64
    %v407 = vmul.f32 %v405, %v64
    %v408 = vsel %vm75, %v406, 0.0
    %v409 = vrot.slane %v408, 4
    %v410 = vadd.f32 %v408, %v409
    %v411 = vrot.slane %v410, 2
    %v412 = vadd.f32 %v410, %v411
    %v413 = vrot.slane %v412, 1
    %v414 = vadd.f32 %v412, %v413
    %v415 = vsel %vm75, %v407, 0.0
    %v416 = vrot.slane %v415, 4
    %v417 = vadd.f32 %v415, %v416
    %v418 = vrot.slane %v417, 2
    %v419 = vadd.f32 %v417, %v418
    %v420 = vrot.slane %v419, 1
    %v421 = vadd.f32 %v419, %v420
    %v422 = vmax.f32 %v414, 0.0
    %v423 = vmax.f32 %v421, 0.0
    %v424 = vmul.f32 %v422, %v65
    %v425 = vmul.f32 %v423, %v65
    %v426 = vsel %vm75, %v424, 0.0
    %427 = vadd.xlane.f32.xlu0 %v426
    %v428 = vpop.xlane.xlu0 %427
    %v429 = vsel %vm75, %v425, 0.0
    %430 = vadd.xlane.f32.xlu0 %v429
    %v431 = vpop.xlane.xlu0 %430
    %v432 = vxor.u32 %v428, 2147483648
    %v433 = vxor.u32 %v431, 2147483648
    %v434 = vmul.f32 %v432, 1.442695
    %v435 = vpow.pop %v434
    %v436 = vmul.f32 %v433, 1.442695
    %v437 = vpow.pop %v436
    %v438 = vadd.f32 %v435, 1.0
    %v439 = vadd.f32 %v437, 1.0
    %v440 = vrcp.pop %v438
    %v441 = vmul.f32 1.0, %v440
    %v442 = vrcp.pop %v439
    %v443 = vmul.f32 1.0, %v442
    %v444 = vmul.f32 %v394, %v441
    %v445 = vmul.f32 %v397, %v443
    %v446 = vadd.f32 %v114, %v444
    %v447 = vadd.f32 %v115, %v445
    %448 = vst [vmem:[#allocation7] sm:$0xff] %v446
    %449 = vst [vmem:[#allocation7 + $0x8] sm:$0xff] %v447
    // Predicated region
    $region46: #{tpu_custom_call.1} parent=1 // pred_check
      _
    $region47: #{tpu_custom_call.1} parent=1 // pred_check_branch
      %451 = sbr.rel (0) target = $region49
    $region48: #{tpu_custom_call.1} parent=1 // pred_region
      %s453 = ssub.s32 256, 256
      %454 = vsyncadd [#allocation4], %s453
      %s455 = sshll.u32 [#allocation7], 4
      %s456 = int_to_ptr.vmem [resolvable:$true] %s455
      %461 = dma.vmem_to_hbm [thread:$0]  %s456, 256, %s9, [#allocation4], 128, 128, 8
    $region49: #{tpu_custom_call.1} parent=1 // pred_fallthru
      _
    // Predicated region
    $region50: #{tpu_custom_call.1} parent=1 // pred_check
      _
    $region51: #{tpu_custom_call.1} parent=1 // pred_check_branch
      %463 = sbr.rel (0) target = $region53
    $region52: #{tpu_custom_call.1} parent=1 // pred_region
      %464 = dma.done [#allocation4], 256
    $region53: #{tpu_custom_call.1} parent=1 // pred_fallthru
      _
    %465 = vsyncpa [#allocation3], 1
    %466 = vsyncpa [#allocation6], 1
    %467 = vsyncpa [#allocation4], 1

</llo_original>
